<compile_context>
chip_gen: v5e
topology: v5e:2x2
jax: 0.10.0
libtpu: 0.0.40
codegen_flags: <defaults>
</compile_context>

<pallas_src>
import jax
import jax.numpy as jnp
from jax.experimental import pallas as pl
from jax.experimental.pallas import tpu as pltpu

# ----------------------------- model config ---------------------------------
FIELD_DIMS = [3, 5, 4, 6]          # num_fields F = 4, sum = 18
EMBED_DIM = 16                     # E
MLP_DIMS = (32, 16)
CROSS_LAYER_SIZES = (8, 8)         # split_half = True
SPLIT_HALF = True
BATCH = 4

F_FIELDS = len(FIELD_DIMS)
C0, C1 = CROSS_LAYER_SIZES
H0_OUT = C0 // 2                   # hidden channels carried after layer 0
FC_IN = H0_OUT + C1                # = 12
M1, M2 = MLP_DIMS

FE = F_FIELDS * EMBED_DIM          # 64   rows of the streamed activation
C0E = C0 * EMBED_DIM               # 128  rows of y0
C1E = C1 * EMBED_DIM               # 128  rows of y1
H0E = H0_OUT * EMBED_DIM           # 64   rows of the carried hidden state
Z_ROWS = F_FIELDS * F_FIELDS * EMBED_DIM   # 256 rows of z0 (== rows of z1)

# The kernel hard-codes split_half=True with exactly two CIN layers and relies
# on H0_OUT == F_FIELDS so the same repeat/tile matrices serve both layers.
assert SPLIT_HALF and len(CROSS_LAYER_SIZES) == 2
assert H0_OUT == F_FIELDS and F_FIELDS * H0_OUT * EMBED_DIM == Z_ROWS


# ------------------------------ Pallas kernel --------------------------------
def xdeepfm_kernel(xft_ref, linsum_ref, reptile_ref, cinw_ref, cinb_ref,
                   mw1_ref, mw2_ref, mbias_ref, head_ref, out_ref):
    """One batch tile.  Activations live as (rows, lanes=batch):

      xft : (F*E, bt) bf16   rows = (field, embed), lanes = sample
      y/z : (chan*E, bt) f32 CIN state; the embed dim rides along in the rows
      out : (1, bt)   f32    lane-dense

    All per-embed structure of the CIN is folded into block-expanded constant
    weights built host-side (kron with I_E), so every stage is one 2-D matmul
    and there are no in-kernel gathers / concatenates / transposes.
    """
    f32 = jnp.float32
    x0 = xft_ref[...].astype(f32)                                   # (FE, bt)

    rep = reptile_ref[:Z_ROWS, :]   # (Z_ROWS, FE): z-row (f,j,e) <- x0[f*E+e]
    til = reptile_ref[Z_ROWS:, :]   # (Z_ROWS, FE): z-row (f,j,e) <- h[j*E+e]

    # ---- CIN layer 0: z0[(f,g,e)] = x0[f,e] * x0[g,e] ------------------------
    r0 = jnp.dot(rep, x0, preferred_element_type=f32)               # (Z_ROWS, bt)
    z0 = r0 * jnp.dot(til, x0, preferred_element_type=f32)
    y0 = jnp.maximum(jnp.dot(cinw_ref[:C0E, :], z0, preferred_element_type=f32)
                     + cinb_ref[:C0E, :], 0.0)                      # (C0E, bt)
    h1 = y0[H0E:, :]                # second half of channels -> carried state

    # ---- CIN layer 1 (last layer, no split): z1[(f,j,e)] = x0[f,e] * h1[j,e] --
    z1 = r0 * jnp.dot(til, h1, preferred_element_type=f32)          # reuse r0
    y1 = jnp.maximum(jnp.dot(cinw_ref[C0E:, :], z1, preferred_element_type=f32)
                     + cinb_ref[C0E:, :], 0.0)                      # (C1E, bt)

    # ---- CIN head: sum over embed dim folded into the expanded fc weights ----
    cin_val = (jnp.dot(head_ref[0:1, :C0E], y0, preferred_element_type=f32)
               + jnp.dot(head_ref[0:1, C0E:C0E + C1E], y1,
                         preferred_element_type=f32))               # (1, bt)

    # ---- MLP (batch kept in the lane dimension) -------------------------------
    # TODO(synk): torch.nn.Dropout is identity here (inference-mode forward).
    a1 = jnp.maximum(jnp.dot(mw1_ref[...], x0, preferred_element_type=f32)
                     + mbias_ref[:M1, :], 0.0)                      # (M1, bt)
    a2 = jnp.maximum(jnp.dot(mw2_ref[...], a1, preferred_element_type=f32)
                     + mbias_ref[M1:, :], 0.0)                      # (M2, bt)
    mlp_val = jnp.dot(head_ref[1:2, :M2], a2, preferred_element_type=f32)

    # linsum already carries the FeaturesLinear sum + lin/fc/mlp scalar biases.
    out_ref[...] = linsum_ref[...] + cin_val + mlp_val


# ------------------------------- wrapper --------------------------------------
def _round_up(x, m):
    return ((x + m - 1) // m) * m


def xdeepfm_forward(xft, lin_sum, kparams):
    """xft: (F*E, B) f32 embeddings in kernel layout; lin_sum: (B,) f32
    FeaturesLinear sum with all scalar biases folded in.  Returns (B,) f32."""
    fe, B = xft.shape
    assert fe == FE
    reptile, cinw, cinb, mw1t, mw2t, mbias, head = kparams

    # Batch tile: lane-dense multiple of 128; >= 2 tiles for v7x megacore when
    # the batch is big enough; capped at 512 rows to stay well inside v7x VMEM.
    if B <= 128:
        b_tile = 128
    elif B <= 1024:
        b_tile = _round_up((B + 1) // 2, 128)
    else:
        b_tile = 512
    num_tiles = (B + b_tile - 1) // b_tile
    b_pad = num_tiles * b_tile

    # Stream the only B-scaling operand in bf16 (halves HBM bytes); the linear
    # term stays f32 (single row) so scalar biases keep full precision.
    xft_bf16 = xft.astype(jnp.bfloat16)
    linsum = lin_sum.reshape(1, B).astype(jnp.float32)
    if b_pad != B:
        xft_bf16 = jnp.pad(xft_bf16, ((0, 0), (0, b_pad - B)))
        linsum = jnp.pad(linsum, ((0, 0), (0, b_pad - B)))

    params = (reptile, cinw, cinb, mw1t, mw2t, mbias, head)
    in_specs = ([pl.BlockSpec((FE, b_tile), lambda t: (0, t)),
                 pl.BlockSpec((1, b_tile), lambda t: (0, t))]
                + [pl.BlockSpec(p.shape, lambda t: (0, 0)) for p in params])

    out = pl.pallas_call(
        xdeepfm_kernel,
        out_shape=jax.ShapeDtypeStruct((1, b_pad), jnp.float32),
        grid_spec=pltpu.PrefetchScalarGridSpec(
            num_scalar_prefetch=0,
            grid=(num_tiles,),
            in_specs=in_specs,
            out_specs=pl.BlockSpec((1, b_tile), lambda t: (0, t)),
        ),
        compiler_params=pltpu.CompilerParams(
            dimension_semantics=("parallel",)),
    )(xft_bf16, linsum, *params)
    # Padded rows carry ReLU(bias) garbage -> always slice back to B.
    return out.reshape(-1)[:B]


# ----------------------- parameter packing (glue) ------------------------------
def pack_kernel_params(conv0_w, conv0_b, conv1_w, conv1_b, fc_w,
                       mlp_w1, mlp_b1, mlp_w2, mlp_b2, mlp_w3):
    I_E = jnp.eye(EMBED_DIM, dtype=jnp.float32)
    I_F = jnp.eye(F_FIELDS, dtype=jnp.float32)
    ones_f = jnp.ones((F_FIELDS, 1), jnp.float32)

    # z-row (f*F + j)*E + e picks x0[f*E+e] (rep) and h[j*E+e] (til).
    rep = jnp.kron(jnp.kron(I_F, ones_f), I_E)        # (Z_ROWS, FE)
    til = jnp.kron(jnp.kron(ones_f, I_F), I_E)        # (Z_ROWS, FE)
    reptile = jnp.concatenate([rep, til], axis=0)     # (2*Z_ROWS, FE)

    # Conv1d(kernel=1) weights expanded over the embed dim (block-diag kron).
    cinw = jnp.concatenate([jnp.kron(conv0_w, I_E),   # (C0E, Z_ROWS)
                            jnp.kron(conv1_w, I_E)], axis=0)
    cinb = jnp.concatenate([jnp.repeat(conv0_b, EMBED_DIM),
                            jnp.repeat(conv1_b, EMBED_DIM)])[:, None]   # (C0E+C1E, 1)

    mw1t = mlp_w1.T                                    # (M1, FE)
    mw2t = mlp_w2.T                                    # (M2, M1)
    mbias = jnp.concatenate([mlp_b1, mlp_b2])[:, None]  # (M1+M2, 1)

    # fc over the e-pooled CIN outputs == an expanded fc row over (channel, e)
    # rows; the un-pooled second half of y0 gets zero weight.  Row 1 = MLP head.
    fc_y0 = jnp.concatenate([jnp.repeat(fc_w[0, :H0_OUT], EMBED_DIM),
                             jnp.zeros(((C0 - H0_OUT) * EMBED_DIM,), jnp.float32)])
    fc_y1 = jnp.repeat(fc_w[0, H0_OUT:], EMBED_DIM)
    head = jnp.stack(
        [jnp.concatenate([fc_y0, fc_y1]),
         jnp.zeros((C0E + C1E,), jnp.float32).at[:M2].set(mlp_w3[:, 0])],
        axis=0)                                        # (2, C0E+C1E)
    return (reptile, cinw, cinb, mw1t, mw2t, mbias, head)


def gather_xft(emb_table, x_off):
    """Gather embeddings directly into the kernel layout (F*E, B): row f*E+e,
    lane b — avoids materializing and re-transposing a (B, F, E) copy."""
    B, F = x_off.shape
    E = emb_table.shape[1]
    rows = (x_off.T[:, None, :] * E
            + jnp.arange(E, dtype=x_off.dtype)[None, :, None])    # (F, E, B)
    return emb_table.reshape(-1)[rows.reshape(F * E, B)]


# --------------------------- pure-JAX reference -------------------------------
def reference_forward(embed_x, lin_vals, rparams):
    (lin_bias, conv_ws, conv_bs, fc_w, fc_b,
     mlp_w1, mlp_b1, mlp_w2, mlp_b2, mlp_w3, mlp_b3) = rparams
    B, F, E = embed_x.shape

    lin = jnp.sum(lin_vals, axis=1, keepdims=True) + lin_bias[None, :]

    x0 = embed_x[:, :, None, :]
    h = embed_x
    xs = []
    n_layers = len(conv_ws)
    for i in range(n_layers):
        z = (x0 * h[:, None, :, :]).reshape(B, -1, E)
        y = jnp.einsum('ck,bke->bce', conv_ws[i], z) + conv_bs[i][None, :, None]
        y = jnp.maximum(y, 0.0)
        if SPLIT_HALF and i != n_layers - 1:
            half = y.shape[1] // 2
            xs.append(y[:, :half])
            h = y[:, half:]
        else:
            xs.append(y)
            h = y
    pooled = jnp.sum(jnp.concatenate(xs, axis=1), axis=2)   # (B, FC_IN)
    cin = pooled @ fc_w.T + fc_b

    xf = embed_x.reshape(B, -1)
    a1 = jnp.maximum(xf @ mlp_w1 + mlp_b1, 0.0)
    a2 = jnp.maximum(a1 @ mlp_w2 + mlp_b2, 0.0)
    mlp = a2 @ mlp_w3 + mlp_b3

    return (lin + cin + mlp)[:, 0]


# ----------------------------------- main --------------------------------------
if __name__ == "__main__":
    key = jax.random.PRNGKey(0)
    ks = jax.random.split(key, 16)
    total_feats = sum(FIELD_DIMS)

    # ----- deterministic parameters (shapes follow the PyTorch __init__) -----
    emb_table = 0.1 * jax.random.normal(ks[0], (total_feats, EMBED_DIM), jnp.float32)
    # The kernel streams activations in bf16; round the table once so the f32
    # reference sees exactly the same (bf16-representable) embedding values.
    emb_table = emb_table.astype(jnp.bfloat16).astype(jnp.float32)
    lin_table = 0.1 * jax.random.normal(ks[1], (total_feats, 1), jnp.float32)
    lin_bias = jnp.zeros((1,), jnp.float32)

    conv0_w = 0.1 * jax.random.normal(ks[2], (C0, F_FIELDS * F_FIELDS), jnp.float32)
    conv0_b = 0.1 * jax.random.normal(ks[3], (C0,), jnp.float32)
    conv1_w = 0.1 * jax.random.normal(ks[4], (C1, F_FIELDS * H0_OUT), jnp.float32)
    conv1_b = 0.1 * jax.random.normal(ks[5], (C1,), jnp.float32)
    fc_w = 0.1 * jax.random.normal(ks[6], (1, FC_IN), jnp.float32)
    fc_b = 0.1 * jax.random.normal(ks[7], (1,), jnp.float32)

    mlp_w1 = 0.1 * jax.random.normal(ks[8], (F_FIELDS * EMBED_DIM, M1), jnp.float32)
    mlp_b1 = 0.1 * jax.random.normal(ks[9], (M1,), jnp.float32)
    mlp_w2 = 0.1 * jax.random.normal(ks[10], (M1, M2), jnp.float32)
    mlp_b2 = 0.1 * jax.random.normal(ks[11], (M2,), jnp.float32)
    mlp_w3 = 0.1 * jax.random.normal(ks[12], (M2, 1), jnp.float32)
    mlp_b3 = 0.1 * jax.random.normal(ks[13], (1,), jnp.float32)

    kparams = pack_kernel_params(conv0_w, conv0_b, conv1_w, conv1_b, fc_w,
                                 mlp_w1, mlp_b1, mlp_w2, mlp_b2, mlp_w3)
    rparams = (lin_bias, [conv0_w, conv1_w], [conv0_b, conv1_b], fc_w, fc_b,
               mlp_w1, mlp_b1, mlp_w2, mlp_b2, mlp_w3, mlp_b3)

    offsets = jnp.concatenate(
        [jnp.zeros((1,), jnp.int32),
         jnp.cumsum(jnp.array(FIELD_DIMS, jnp.int32))[:-1]])

    # Small batch (single 128-lane tile) and a larger ragged batch (two tiles,
    # exercises padding + the "parallel" grid axis).
    for batch, xkey in ((BATCH, ks[14]), (300, ks[15])):
        xk = jax.random.split(xkey, F_FIELDS)
        x = jnp.stack([jax.random.randint(xk[i], (batch,), 0, fd, dtype=jnp.int32)
                       for i, fd in enumerate(FIELD_DIMS)], axis=1)   # (B, F) int32
        x_off = x + offsets[None, :]

        # glue: gathers + linear-term pre-sum (all scalar biases folded in here)
        xft = gather_xft(emb_table, x_off)                            # (F*E, B)
        lin_vals = lin_table[x_off][..., 0]                           # (B, F)
        lin_sum = jnp.sum(lin_vals, axis=1) + (lin_bias[0] + fc_b[0] + mlp_b3[0])

        out = jax.block_until_ready(xdeepfm_forward(xft, lin_sum, kparams))

        embed_x = emb_table[x_off]                                    # (B, F, E)
        ref = jax.block_until_ready(
            reference_forward(embed_x, lin_vals, rparams))

        assert out.shape == (batch,)
        # Default-precision MXU matmuls (bf16 passes) differ slightly between
        # the fused kernel and the einsum reference -> tolerance ~1e-2.
        assert bool(jnp.allclose(out, ref, rtol=1e-2, atol=1e-2)), (
            batch, float(jnp.max(jnp.abs(out - ref))))

    print("KERNEL_OK")
</pallas_src>

<mosaic_0001>
module attributes {stable_mosaic.version = 11 : i64} {
  func.func @xdeepfm_kernel(%arg0: i32, %arg1: memref<64x128xbf16, #tpu.memory_space<vmem>>, %arg2: memref<1x128xf32, #tpu.memory_space<vmem>>, %arg3: memref<512x64xf32, #tpu.memory_space<vmem>>, %arg4: memref<256x256xf32, #tpu.memory_space<vmem>>, %arg5: memref<256x1xf32, #tpu.memory_space<vmem>>, %arg6: memref<32x64xf32, #tpu.memory_space<vmem>>, %arg7: memref<16x32xf32, #tpu.memory_space<vmem>>, %arg8: memref<48x1xf32, #tpu.memory_space<vmem>>, %arg9: memref<2x256xf32, #tpu.memory_space<vmem>>, %arg10: memref<1x128xf32, #tpu.memory_space<vmem>>) attributes {dimension_semantics = [#tpu.dimension_semantics<parallel>], iteration_bounds = array<i64: 1>, scalar_prefetch = 0 : i64, scratch_operands = 0 : i64, tpu.core_type = #tpu.core_type<tc>, window_params = [{transform_indices = @transform_0, window_bounds = array<i64: 64, 128>}, {transform_indices = @transform_1, window_bounds = array<i64: 1, 128>}, {pipeline_mode = #tpu.pipeline_mode<synchronous>, transform_indices = @transform_2, window_bounds = array<i64: 512, 64>}, {pipeline_mode = #tpu.pipeline_mode<synchronous>, transform_indices = @transform_3, window_bounds = array<i64: 256, 256>}, {pipeline_mode = #tpu.pipeline_mode<synchronous>, transform_indices = @transform_4, window_bounds = array<i64: 256, 1>}, {pipeline_mode = #tpu.pipeline_mode<synchronous>, transform_indices = @transform_5, window_bounds = array<i64: 32, 64>}, {pipeline_mode = #tpu.pipeline_mode<synchronous>, transform_indices = @transform_6, window_bounds = array<i64: 16, 32>}, {pipeline_mode = #tpu.pipeline_mode<synchronous>, transform_indices = @transform_7, window_bounds = array<i64: 48, 1>}, {pipeline_mode = #tpu.pipeline_mode<synchronous>, transform_indices = @transform_8, window_bounds = array<i64: 2, 256>}, {transform_indices = @transform_9, window_bounds = array<i64: 1, 128>}]} {
    %c0 = arith.constant 0 : index
    %c0_0 = arith.constant 0 : index
    %0 = vector.load %arg1[%c0, %c0_0] : memref<64x128xbf16, #tpu.memory_space<vmem>>, vector<64x128xbf16>
    %1 = arith.extf %0 : vector<64x128xbf16> to vector<64x128xf32>
    %c0_1 = arith.constant 0 : index
    %c0_2 = arith.constant 0 : index
    %2 = vector.load %arg3[%c0_1, %c0_2] : memref<512x64xf32, #tpu.memory_space<vmem>>, vector<256x64xf32>
    %c256 = arith.constant 256 : index
    %c0_3 = arith.constant 0 : index
    %3 = vector.load %arg3[%c256, %c0_3] : memref<512x64xf32, #tpu.memory_space<vmem>>, vector<256x64xf32>
    %cst = arith.constant dense<0.000000e+00> : vector<256x128xf32>
    %4 = tpu.matmul %2, %1, %cst {dimension_numbers = #tpu.dot_dimension_numbers<[1], [0], [0], [1], [0, 0, 1, 1], [], []>} : vector<256x64xf32>, vector<64x128xf32>, vector<256x128xf32> -> vector<256x128xf32>
    %cst_4 = arith.constant dense<0.000000e+00> : vector<256x128xf32>
    %5 = tpu.matmul %3, %1, %cst_4 {dimension_numbers = #tpu.dot_dimension_numbers<[1], [0], [0], [1], [0, 0, 1, 1], [], []>} : vector<256x64xf32>, vector<64x128xf32>, vector<256x128xf32> -> vector<256x128xf32>
    %6 = arith.mulf %4, %5 : vector<256x128xf32>
    %c0_5 = arith.constant 0 : index
    %c0_6 = arith.constant 0 : index
    %7 = vector.load %arg4[%c0_5, %c0_6] : memref<256x256xf32, #tpu.memory_space<vmem>>, vector<128x256xf32>
    %cst_7 = arith.constant dense<0.000000e+00> : vector<128x128xf32>
    %8 = tpu.matmul %7, %6, %cst_7 {dimension_numbers = #tpu.dot_dimension_numbers<[1], [0], [0], [1], [0, 0, 1, 1], [], []>} : vector<128x256xf32>, vector<256x128xf32>, vector<128x128xf32> -> vector<128x128xf32>
    %c0_8 = arith.constant 0 : index
    %c0_9 = arith.constant 0 : index
    %9 = vector.load %arg5[%c0_8, %c0_9] : memref<256x1xf32, #tpu.memory_space<vmem>>, vector<128x1xf32>
    %10 = vector.broadcast %9 : vector<128x1xf32> to vector<128x128xf32>
    %11 = arith.addf %8, %10 : vector<128x128xf32>
    %cst_10 = arith.constant 0.000000e+00 : f32
    %12 = vector.broadcast %cst_10 : f32 to vector<128x128xf32>
    %13 = arith.maximumf %11, %12 : vector<128x128xf32>
    %14 = vector.extract_strided_slice %13 {offsets = [64, 0], sizes = [64, 128], strides = [1, 1]} : vector<128x128xf32> to vector<64x128xf32>
    %cst_11 = arith.constant dense<0.000000e+00> : vector<256x128xf32>
    %15 = tpu.matmul %3, %14, %cst_11 {dimension_numbers = #tpu.dot_dimension_numbers<[1], [0], [0], [1], [0, 0, 1, 1], [], []>} : vector<256x64xf32>, vector<64x128xf32>, vector<256x128xf32> -> vector<256x128xf32>
    %16 = arith.mulf %4, %15 : vector<256x128xf32>
    %c128 = arith.constant 128 : index
    %c0_12 = arith.constant 0 : index
    %17 = vector.load %arg4[%c128, %c0_12] : memref<256x256xf32, #tpu.memory_space<vmem>>, vector<128x256xf32>
    %cst_13 = arith.constant dense<0.000000e+00> : vector<128x128xf32>
    %18 = tpu.matmul %17, %16, %cst_13 {dimension_numbers = #tpu.dot_dimension_numbers<[1], [0], [0], [1], [0, 0, 1, 1], [], []>} : vector<128x256xf32>, vector<256x128xf32>, vector<128x128xf32> -> vector<128x128xf32>
    %c128_14 = arith.constant 128 : index
    %c0_15 = arith.constant 0 : index
    %19 = vector.load %arg5[%c128_14, %c0_15] : memref<256x1xf32, #tpu.memory_space<vmem>>, vector<128x1xf32>
    %20 = vector.broadcast %19 : vector<128x1xf32> to vector<128x128xf32>
    %21 = arith.addf %18, %20 : vector<128x128xf32>
    %cst_16 = arith.constant 0.000000e+00 : f32
    %22 = vector.broadcast %cst_16 : f32 to vector<128x128xf32>
    %23 = arith.maximumf %21, %22 : vector<128x128xf32>
    %c0_17 = arith.constant 0 : index
    %c0_18 = arith.constant 0 : index
    %24 = vector.load %arg9[%c0_17, %c0_18] : memref<2x256xf32, #tpu.memory_space<vmem>>, vector<1x128xf32>
    %cst_19 = arith.constant dense<0.000000e+00> : vector<1x128xf32>
    %25 = tpu.matmul %24, %13, %cst_19 {dimension_numbers = #tpu.dot_dimension_numbers<[1], [0], [0], [1], [0, 0, 1, 1], [], []>} : vector<1x128xf32>, vector<128x128xf32>, vector<1x128xf32> -> vector<1x128xf32>
    %c0_20 = arith.constant 0 : index
    %c128_21 = arith.constant 128 : index
    %26 = vector.load %arg9[%c0_20, %c128_21] : memref<2x256xf32, #tpu.memory_space<vmem>>, vector<1x128xf32>
    %cst_22 = arith.constant dense<0.000000e+00> : vector<1x128xf32>
    %27 = tpu.matmul %26, %23, %cst_22 {dimension_numbers = #tpu.dot_dimension_numbers<[1], [0], [0], [1], [0, 0, 1, 1], [], []>} : vector<1x128xf32>, vector<128x128xf32>, vector<1x128xf32> -> vector<1x128xf32>
    %28 = arith.addf %25, %27 : vector<1x128xf32>
    %c0_23 = arith.constant 0 : index
    %c0_24 = arith.constant 0 : index
    %29 = vector.load %arg6[%c0_23, %c0_24] : memref<32x64xf32, #tpu.memory_space<vmem>>, vector<32x64xf32>
    %cst_25 = arith.constant dense<0.000000e+00> : vector<32x128xf32>
    %30 = tpu.matmul %29, %1, %cst_25 {dimension_numbers = #tpu.dot_dimension_numbers<[1], [0], [0], [1], [0, 0, 1, 1], [], []>} : vector<32x64xf32>, vector<64x128xf32>, vector<32x128xf32> -> vector<32x128xf32>
    %c0_26 = arith.constant 0 : index
    %c0_27 = arith.constant 0 : index
    %31 = vector.load %arg8[%c0_26, %c0_27] : memref<48x1xf32, #tpu.memory_space<vmem>>, vector<32x1xf32>
    %32 = vector.broadcast %31 : vector<32x1xf32> to vector<32x128xf32>
    %33 = arith.addf %30, %32 : vector<32x128xf32>
    %cst_28 = arith.constant 0.000000e+00 : f32
    %34 = vector.broadcast %cst_28 : f32 to vector<32x128xf32>
    %35 = arith.maximumf %33, %34 : vector<32x128xf32>
    %c0_29 = arith.constant 0 : index
    %c0_30 = arith.constant 0 : index
    %36 = vector.load %arg7[%c0_29, %c0_30] : memref<16x32xf32, #tpu.memory_space<vmem>>, vector<16x32xf32>
    %cst_31 = arith.constant dense<0.000000e+00> : vector<16x128xf32>
    %37 = tpu.matmul %36, %35, %cst_31 {dimension_numbers = #tpu.dot_dimension_numbers<[1], [0], [0], [1], [0, 0, 1, 1], [], []>} : vector<16x32xf32>, vector<32x128xf32>, vector<16x128xf32> -> vector<16x128xf32>
    %c32 = arith.constant 32 : index
    %c0_32 = arith.constant 0 : index
    %38 = vector.load %arg8[%c32, %c0_32] : memref<48x1xf32, #tpu.memory_space<vmem>>, vector<16x1xf32>
    %39 = vector.broadcast %38 : vector<16x1xf32> to vector<16x128xf32>
    %40 = arith.addf %37, %39 : vector<16x128xf32>
    %cst_33 = arith.constant 0.000000e+00 : f32
    %41 = vector.broadcast %cst_33 : f32 to vector<16x128xf32>
    %42 = arith.maximumf %40, %41 : vector<16x128xf32>
    %c1 = arith.constant 1 : index
    %c0_34 = arith.constant 0 : index
    %43 = vector.load %arg9[%c1, %c0_34] : memref<2x256xf32, #tpu.memory_space<vmem>>, vector<1x16xf32>
    %cst_35 = arith.constant dense<0.000000e+00> : vector<1x128xf32>
    %44 = tpu.matmul %43, %42, %cst_35 {dimension_numbers = #tpu.dot_dimension_numbers<[1], [0], [0], [1], [0, 0, 1, 1], [], []>} : vector<1x16xf32>, vector<16x128xf32>, vector<1x128xf32> -> vector<1x128xf32>
    %c0_36 = arith.constant 0 : index
    %c0_37 = arith.constant 0 : index
    %45 = vector.load %arg2[%c0_36, %c0_37] : memref<1x128xf32, #tpu.memory_space<vmem>>, vector<1x128xf32>
    %46 = arith.addf %45, %28 : vector<1x128xf32>
    %47 = arith.addf %46, %44 : vector<1x128xf32>
    %c0_38 = arith.constant 0 : index
    %c0_39 = arith.constant 0 : index
    %48 = vector.load %arg10[%c0_38, %c0_39] : memref<1x128xf32, #tpu.memory_space<vmem>>, vector<1x128xf32>
    tpu.vector_store %arg10[%c0_38, %c0_39], %47 {strides = array<i32>} : memref<1x128xf32, #tpu.memory_space<vmem>>, vector<1x128xf32>,
    return
  }
  func.func @transform_0(%arg0: i32) -> (i32, i32) {
    %c0_i32 = arith.constant 0 : i32
    %c0_i32_0 = arith.constant 0 : i32
    return %c0_i32, %arg0 : i32, i32
  }
  func.func @transform_1(%arg0: i32) -> (i32, i32) {
    %c0_i32 = arith.constant 0 : i32
    %c0_i32_0 = arith.constant 0 : i32
    return %c0_i32, %arg0 : i32, i32
  }
  func.func @transform_2(%arg0: i32) -> (i32, i32) {
    %c0_i32 = arith.constant 0 : i32
    %c0_i32_0 = arith.constant 0 : i32
    %c0_i32_1 = arith.constant 0 : i32
    return %c0_i32, %c0_i32_0 : i32, i32
  }
  func.func @transform_3(%arg0: i32) -> (i32, i32) {
    %c0_i32 = arith.constant 0 : i32
    %c0_i32_0 = arith.constant 0 : i32
    %c0_i32_1 = arith.constant 0 : i32
    return %c0_i32, %c0_i32_0 : i32, i32
  }
  func.func @transform_4(%arg0: i32) -> (i32, i32) {
    %c0_i32 = arith.constant 0 : i32
    %c0_i32_0 = arith.constant 0 : i32
    %c0_i32_1 = arith.constant 0 : i32
    return %c0_i32, %c0_i32_0 : i32, i32
  }
  func.func @transform_5(%arg0: i32) -> (i32, i32) {
    %c0_i32 = arith.constant 0 : i32
    %c0_i32_0 = arith.constant 0 : i32
    %c0_i32_1 = arith.constant 0 : i32
    return %c0_i32, %c0_i32_0 : i32, i32
  }
  func.func @transform_6(%arg0: i32) -> (i32, i32) {
    %c0_i32 = arith.constant 0 : i32
    %c0_i32_0 = arith.constant 0 : i32
    %c0_i32_1 = arith.constant 0 : i32
    return %c0_i32, %c0_i32_0 : i32, i32
  }
  func.func @transform_7(%arg0: i32) -> (i32, i32) {
    %c0_i32 = arith.constant 0 : i32
    %c0_i32_0 = arith.constant 0 : i32
    %c0_i32_1 = arith.constant 0 : i32
    return %c0_i32, %c0_i32_0 : i32, i32
  }
  func.func @transform_8(%arg0: i32) -> (i32, i32) {
    %c0_i32 = arith.constant 0 : i32
    %c0_i32_0 = arith.constant 0 : i32
    %c0_i32_1 = arith.constant 0 : i32
    return %c0_i32, %c0_i32_0 : i32, i32
  }
  func.func @transform_9(%arg0: i32) -> (i32, i32) {
    %c0_i32 = arith.constant 0 : i32
    %c0_i32_0 = arith.constant 0 : i32
    return %c0_i32, %arg0 : i32, i32
  }
}

</mosaic_0001>

<llo_original>
// kernel: tpu_custom_call.1
$region0: #{tpu_custom_call.1}
  #allocation0 [shape = 'u32[]', space=smem, size = 0x4, offset = 0x4, fixed_abs, tag = 'smem constant byte address 0x4 - core index']
  #allocation1 [shape = 'u32[72,128]{1,0:T(1,128)}', space=vmem, size = 0x9000, scoped, tag = 'internal scratch']
  %s0 = inlined_call_operand.vmem [shape: bf16[64,128], index: 0, kind: input, shape index: {}]
  %s1 = inlined_call_operand.vmem [shape: f32[1,128], index: 1, kind: input, shape index: {}]
  %s2 = inlined_call_operand.vmem [shape: f32[512,64], index: 2, kind: input, shape index: {}]
  %s3 = inlined_call_operand.vmem [shape: f32[256,256], index: 3, kind: input, shape index: {}]
  %s4 = inlined_call_operand.vmem [shape: f32[256,1], index: 4, kind: input, shape index: {}]
  %s5 = inlined_call_operand.vmem [shape: f32[32,64], index: 5, kind: input, shape index: {}]
  %s6 = inlined_call_operand.vmem [shape: f32[16,32], index: 6, kind: input, shape index: {}]
  %s7 = inlined_call_operand.vmem [shape: f32[48,1], index: 7, kind: input, shape index: {}]
  %s8 = inlined_call_operand.vmem [shape: f32[2,256], index: 8, kind: input, shape index: {}]
  %s9 = inlined_call_operand.hbm [shape: f32[1,128], index: 9, kind: output, shape index: {}]
  %s10 = sld [smem:[#allocation0]]
  $region46: #{tpu_custom_call.1} parent=0
    _
  %s12 = ssub.s32 1, %s10
  %s13 = scalar_select 0, %s12, %s10
  $region1: #{tpu_custom_call.1} parent=0
    #allocation2 [shape = 'u8[512]{0}', space=vmem, size = 0x400, scoped, tag = 'output window, operand 0, single buffered']
    #allocation3 [shape = 's32[1]{0}', space=sflag, size = 0x4, scoped, tag = 'scoped memory for tpu_custom_call.1']
    %14 = vsyncpa [#allocation3], 0
    // Predicated region
    $region2: #{tpu_custom_call.1} parent=1 // pred_check
      _
    $region3: #{tpu_custom_call.1} parent=1 // pred_check_branch
      %16 = sbr.rel (0) target = $region5
    $region4: #{tpu_custom_call.1} parent=1 // pred_region
      _
    $region5: #{tpu_custom_call.1} parent=1 // pred_fallthru
      _
    // Predicated region
    $region6: #{tpu_custom_call.1} parent=1 // pred_check
      _
    $region7: #{tpu_custom_call.1} parent=1 // pred_check_branch
      %18 = sbr.rel (0) target = $region9
    $region8: #{tpu_custom_call.1} parent=1 // pred_region
      _
    $region9: #{tpu_custom_call.1} parent=1 // pred_fallthru
      _
    // Predicated region
    $region10: #{tpu_custom_call.1} parent=1 // pred_check
      _
    $region11: #{tpu_custom_call.1} parent=1 // pred_check_branch
      %20 = sbr.rel (0) target = $region13
    $region12: #{tpu_custom_call.1} parent=1 // pred_region
      _
    $region13: #{tpu_custom_call.1} parent=1 // pred_fallthru
      _
    // Predicated region
    $region14: #{tpu_custom_call.1} parent=1 // pred_check
      _
    $region15: #{tpu_custom_call.1} parent=1 // pred_check_branch
      %22 = sbr.rel (0) target = $region17
    $region16: #{tpu_custom_call.1} parent=1 // pred_region
      _
    $region17: #{tpu_custom_call.1} parent=1 // pred_fallthru
      _
    // Predicated region
    $region18: #{tpu_custom_call.1} parent=1 // pred_check
      _
    $region19: #{tpu_custom_call.1} parent=1 // pred_check_branch
      %24 = sbr.rel (0) target = $region21
    $region20: #{tpu_custom_call.1} parent=1 // pred_region
      _
    $region21: #{tpu_custom_call.1} parent=1 // pred_fallthru
      _
    // Predicated region
    $region22: #{tpu_custom_call.1} parent=1 // pred_check
      _
    $region23: #{tpu_custom_call.1} parent=1 // pred_check_branch
      %26 = sbr.rel (0) target = $region25
    $region24: #{tpu_custom_call.1} parent=1 // pred_region
      _
    $region25: #{tpu_custom_call.1} parent=1 // pred_fallthru
      _
    // Predicated region
    $region26: #{tpu_custom_call.1} parent=1 // pred_check
      _
    $region27: #{tpu_custom_call.1} parent=1 // pred_check_branch
      %28 = sbr.rel (0) target = $region29
    $region28: #{tpu_custom_call.1} parent=1 // pred_region
      _
    $region29: #{tpu_custom_call.1} parent=1 // pred_fallthru
      _
    // Predicated region
    $region30: #{tpu_custom_call.1} parent=1 // pred_check
      _
    $region31: #{tpu_custom_call.1} parent=1 // pred_check_branch
      %30 = sbr.rel (0) target = $region33
    $region32: #{tpu_custom_call.1} parent=1 // pred_region
      _
    $region33: #{tpu_custom_call.1} parent=1 // pred_fallthru
      _
    // Predicated region
    $region34: #{tpu_custom_call.1} parent=1 // pred_check
      _
    $region35: #{tpu_custom_call.1} parent=1 // pred_check_branch
      %32 = sbr.rel (0) target = $region37
    $region36: #{tpu_custom_call.1} parent=1 // pred_region
      _
    $region37: #{tpu_custom_call.1} parent=1 // pred_fallthru
      _
    %v33 = vld [vmem:[%s0] sm:$0xf]
    %v34 = vld [vmem:[%s0 + $0x4] sm:$0xf]
    %v35 = vld [vmem:[%s0 + $0x8] sm:$0xf]
    %v36 = vld [vmem:[%s0 + $0xc] sm:$0xf]
    %v37 = vld [vmem:[%s0 + $0x10] sm:$0xf]
    %v38 = vld [vmem:[%s0 + $0x14] sm:$0xf]
    %v39 = vld [vmem:[%s0 + $0x18] sm:$0xf]
    %v40 = vld [vmem:[%s0 + $0x1c] sm:$0xf]
    %v41 = vunpack.c.l.bf16 %v33
    %v42 = vunpack.c.l.bf16 %v34
    %v43 = vunpack.c.l.bf16 %v35
    %v44 = vunpack.c.l.bf16 %v36
    %v45 = vunpack.c.l.bf16 %v37
    %v46 = vunpack.c.l.bf16 %v38
    %v47 = vunpack.c.l.bf16 %v39
    %v48 = vunpack.c.l.bf16 %v40
    %v49 = vld [vmem:[%s2] sm:$0xff]
    %v50 = vld [vmem:[%s2 + $0x8] sm:$0xff]
    %v51 = vld [vmem:[%s2 + $0x10] sm:$0xff]
    %v52 = vld [vmem:[%s2 + $0x18] sm:$0xff]
    %v53 = vld [vmem:[%s2 + $0x20] sm:$0xff]
    %v54 = vld [vmem:[%s2 + $0x28] sm:$0xff]
    %v55 = vld [vmem:[%s2 + $0x30] sm:$0xff]
    %v56 = vld [vmem:[%s2 + $0x38] sm:$0xff]
    %v57 = vld [vmem:[%s2 + $0x40] sm:$0xff]
    %v58 = vld [vmem:[%s2 + $0x48] sm:$0xff]
    %v59 = vld [vmem:[%s2 + $0x50] sm:$0xff]
    %v60 = vld [vmem:[%s2 + $0x58] sm:$0xff]
    %v61 = vld [vmem:[%s2 + $0x60] sm:$0xff]
    %v62 = vld [vmem:[%s2 + $0x68] sm:$0xff]
    %v63 = vld [vmem:[%s2 + $0x70] sm:$0xff]
    %v64 = vld [vmem:[%s2 + $0x78] sm:$0xff]
    %v65 = vld [vmem:[%s2 + $0x80] sm:$0xff]
    %v66 = vld [vmem:[%s2 + $0x88] sm:$0xff]
    %v67 = vld [vmem:[%s2 + $0x90] sm:$0xff]
    %v68 = vld [vmem:[%s2 + $0x98] sm:$0xff]
    %v69 = vld [vmem:[%s2 + $0xa0] sm:$0xff]
    %v70 = vld [vmem:[%s2 + $0xa8] sm:$0xff]
    %v71 = vld [vmem:[%s2 + $0xb0] sm:$0xff]
    %v72 = vld [vmem:[%s2 + $0xb8] sm:$0xff]
    %v73 = vld [vmem:[%s2 + $0xc0] sm:$0xff]
    %v74 = vld [vmem:[%s2 + $0xc8] sm:$0xff]
    %v75 = vld [vmem:[%s2 + $0xd0] sm:$0xff]
    %v76 = vld [vmem:[%s2 + $0xd8] sm:$0xff]
    %v77 = vld [vmem:[%s2 + $0xe0] sm:$0xff]
    %v78 = vld [vmem:[%s2 + $0xe8] sm:$0xff]
    %v79 = vld [vmem:[%s2 + $0xf0] sm:$0xff]
    %v80 = vld [vmem:[%s2 + $0xf8] sm:$0xff]
    %v81 = vld [vmem:[%s2 + $0x100] sm:$0xff]
    %v82 = vld [vmem:[%s2 + $0x108] sm:$0xff]
    %v83 = vld [vmem:[%s2 + $0x110] sm:$0xff]
    %v84 = vld [vmem:[%s2 + $0x118] sm:$0xff]
    %v85 = vld [vmem:[%s2 + $0x120] sm:$0xff]
    %v86 = vld [vmem:[%s2 + $0x128] sm:$0xff]
    %v87 = vld [vmem:[%s2 + $0x130] sm:$0xff]
    %v88 = vld [vmem:[%s2 + $0x138] sm:$0xff]
    %v89 = vld [vmem:[%s2 + $0x140] sm:$0xff]
    %v90 = vld [vmem:[%s2 + $0x148] sm:$0xff]
    %v91 = vld [vmem:[%s2 + $0x150] sm:$0xff]
    %v92 = vld [vmem:[%s2 + $0x158] sm:$0xff]
    %v93 = vld [vmem:[%s2 + $0x160] sm:$0xff]
    %v94 = vld [vmem:[%s2 + $0x168] sm:$0xff]
    %v95 = vld [vmem:[%s2 + $0x170] sm:$0xff]
    %v96 = vld [vmem:[%s2 + $0x178] sm:$0xff]
    %v97 = vld [vmem:[%s2 + $0x180] sm:$0xff]
    %v98 = vld [vmem:[%s2 + $0x188] sm:$0xff]
    %v99 = vld [vmem:[%s2 + $0x190] sm:$0xff]
    %v100 = vld [vmem:[%s2 + $0x198] sm:$0xff]
    %v101 = vld [vmem:[%s2 + $0x1a0] sm:$0xff]
    %v102 = vld [vmem:[%s2 + $0x1a8] sm:$0xff]
    %v103 = vld [vmem:[%s2 + $0x1b0] sm:$0xff]
    %v104 = vld [vmem:[%s2 + $0x1b8] sm:$0xff]
    %v105 = vld [vmem:[%s2 + $0x1c0] sm:$0xff]
    %v106 = vld [vmem:[%s2 + $0x1c8] sm:$0xff]
    %v107 = vld [vmem:[%s2 + $0x1d0] sm:$0xff]
    %v108 = vld [vmem:[%s2 + $0x1d8] sm:$0xff]
    %v109 = vld [vmem:[%s2 + $0x1e0] sm:$0xff]
    %v110 = vld [vmem:[%s2 + $0x1e8] sm:$0xff]
    %v111 = vld [vmem:[%s2 + $0x1f0] sm:$0xff]
    %v112 = vld [vmem:[%s2 + $0x1f8] sm:$0xff]
    %vm113 = vcmask 523264
    %v115 = vsel %vm113, %v49, 0
    %v118 = vsel %vm113, %v50, 0
    %v121 = vsel %vm113, %v51, 0
    %v124 = vsel %vm113, %v52, 0
    %v127 = vsel %vm113, %v53, 0
    %v130 = vsel %vm113, %v54, 0
    %v133 = vsel %vm113, %v55, 0
    %v136 = vsel %vm113, %v56, 0
    %v139 = vsel %vm113, %v57, 0
    %v142 = vsel %vm113, %v58, 0
    %v145 = vsel %vm113, %v59, 0
    %v148 = vsel %vm113, %v60, 0
    %v151 = vsel %vm113, %v61, 0
    %v154 = vsel %vm113, %v62, 0
    %v157 = vsel %vm113, %v63, 0
    %v160 = vsel %vm113, %v64, 0
    %v163 = vsel %vm113, %v65, 0
    %v166 = vsel %vm113, %v66, 0
    %v169 = vsel %vm113, %v67, 0
    %v172 = vsel %vm113, %v68, 0
    %v175 = vsel %vm113, %v69, 0
    %v178 = vsel %vm113, %v70, 0
    %v181 = vsel %vm113, %v71, 0
    %v184 = vsel %vm113, %v72, 0
    %v187 = vsel %vm113, %v73, 0
    %v190 = vsel %vm113, %v74, 0
    %v193 = vsel %vm113, %v75, 0
    %v196 = vsel %vm113, %v76, 0
    %v199 = vsel %vm113, %v77, 0
    %v202 = vsel %vm113, %v78, 0
    %v205 = vsel %vm113, %v79, 0
    %v208 = vsel %vm113, %v80, 0
    %210 = vmatpush.msra.mxu0 0.0
    %211 = vmatpush.msra.mxu0 0.0
    %212 = vmatpush.msra.mxu0 0.0
    %213 = vmatpush.msra.mxu0 0.0
    %214 = vmatpush.msra.mxu0 0.0
    %215 = vmatpush.msra.mxu0 0.0
    %216 = vmatpush.msra.mxu0 0.0
    %217 = vmatpush.msra.mxu0 0.0
    %218 = vmatpush.msra.mxu0 %v48
    %219 = vmatpush.msra.mxu0 %v47
    %220 = vmatpush.msra.mxu0 %v46
    %221 = vmatpush.msra.mxu0 %v45
    %222 = vmatpush.msra.mxu0 %v44
    %223 = vmatpush.msra.mxu0 %v43
    %224 = vmatpush.msra.mxu0 %v42
    %225 = vmatpush.msra.mxu0 %v41
    %226 = vmatmul.f32.gmra.mxu0 %v115
    %v227 = vpop.f32.mrf.mxu0
    %v228 = vadd.f32 0.0, %v227
    %229 = vmatmul.f32.gmra.mxu0 %v118
    %v230 = vpop.f32.mrf.mxu0
    %v231 = vadd.f32 0.0, %v230
    %232 = vmatmul.f32.gmra.mxu0 %v121
    %v233 = vpop.f32.mrf.mxu0
    %v234 = vadd.f32 0.0, %v233
    %235 = vmatmul.f32.gmra.mxu0 %v124
    %v236 = vpop.f32.mrf.mxu0
    %v237 = vadd.f32 0.0, %v236
    %238 = vmatmul.f32.gmra.mxu0 %v127
    %v239 = vpop.f32.mrf.mxu0
    %v240 = vadd.f32 0.0, %v239
    %241 = vmatmul.f32.gmra.mxu0 %v130
    %v242 = vpop.f32.mrf.mxu0
    %v243 = vadd.f32 0.0, %v242
    %244 = vmatmul.f32.gmra.mxu0 %v133
    %v245 = vpop.f32.mrf.mxu0
    %v246 = vadd.f32 0.0, %v245
    %247 = vmatmul.f32.gmra.mxu0 %v136
    %v248 = vpop.f32.mrf.mxu0
    %v249 = vadd.f32 0.0, %v248
    %250 = vmatmul.f32.gmra.mxu0 %v139
    %v251 = vpop.f32.mrf.mxu0
    %v252 = vadd.f32 0.0, %v251
    %253 = vmatmul.f32.gmra.mxu0 %v142
    %v254 = vpop.f32.mrf.mxu0
    %v255 = vadd.f32 0.0, %v254
    %256 = vmatmul.f32.gmra.mxu0 %v145
    %v257 = vpop.f32.mrf.mxu0
    %v258 = vadd.f32 0.0, %v257
    %259 = vmatmul.f32.gmra.mxu0 %v148
    %v260 = vpop.f32.mrf.mxu0
    %v261 = vadd.f32 0.0, %v260
    %262 = vmatmul.f32.gmra.mxu0 %v151
    %v263 = vpop.f32.mrf.mxu0
    %v264 = vadd.f32 0.0, %v263
    %265 = vmatmul.f32.gmra.mxu0 %v154
    %v266 = vpop.f32.mrf.mxu0
    %v267 = vadd.f32 0.0, %v266
    %268 = vmatmul.f32.gmra.mxu0 %v157
    %v269 = vpop.f32.mrf.mxu0
    %v270 = vadd.f32 0.0, %v269
    %271 = vmatmul.f32.gmra.mxu0 %v160
    %v272 = vpop.f32.mrf.mxu0
    %v273 = vadd.f32 0.0, %v272
    %274 = vmatmul.f32.gmra.mxu0 %v163
    %v275 = vpop.f32.mrf.mxu0
    %v276 = vadd.f32 0.0, %v275
    %277 = vmatmul.f32.gmra.mxu0 %v166
    %v278 = vpop.f32.mrf.mxu0
    %v279 = vadd.f32 0.0, %v278
    %280 = vmatmul.f32.gmra.mxu0 %v169
    %v281 = vpop.f32.mrf.mxu0
    %v282 = vadd.f32 0.0, %v281
    %283 = vmatmul.f32.gmra.mxu0 %v172
    %v284 = vpop.f32.mrf.mxu0
    %v285 = vadd.f32 0.0, %v284
    %286 = vmatmul.f32.gmra.mxu0 %v175
    %v287 = vpop.f32.mrf.mxu0
    %v288 = vadd.f32 0.0, %v287
    %289 = vmatmul.f32.gmra.mxu0 %v178
    %v290 = vpop.f32.mrf.mxu0
    %v291 = vadd.f32 0.0, %v290
    %292 = vmatmul.f32.gmra.mxu0 %v181
    %v293 = vpop.f32.mrf.mxu0
    %v294 = vadd.f32 0.0, %v293
    %295 = vmatmul.f32.gmra.mxu0 %v184
    %v296 = vpop.f32.mrf.mxu0
    %v297 = vadd.f32 0.0, %v296
    %298 = vmatmul.f32.gmra.mxu0 %v187
    %v299 = vpop.f32.mrf.mxu0
    %v300 = vadd.f32 0.0, %v299
    %301 = vmatmul.f32.gmra.mxu0 %v190
    %v302 = vpop.f32.mrf.mxu0
    %v303 = vadd.f32 0.0, %v302
    %304 = vmatmul.f32.gmra.mxu0 %v193
    %v305 = vpop.f32.mrf.mxu0
    %v306 = vadd.f32 0.0, %v305
    %307 = vmatmul.f32.gmra.mxu0 %v196
    %v308 = vpop.f32.mrf.mxu0
    %v309 = vadd.f32 0.0, %v308
    %310 = vmatmul.f32.gmra.mxu0 %v199
    %v311 = vpop.f32.mrf.mxu0
    %v312 = vadd.f32 0.0, %v311
    %313 = vmatmul.f32.gmra.mxu0 %v202
    %v314 = vpop.f32.mrf.mxu0
    %v315 = vadd.f32 0.0, %v314
    %316 = vmatmul.f32.gmra.mxu0 %v205
    %v317 = vpop.f32.mrf.mxu0
    %v318 = vadd.f32 0.0, %v317
    %319 = vmatmul.f32.gmra.mxu0 %v208
    %v320 = vpop.f32.mrf.mxu0
    %v321 = vadd.f32 0.0, %v320
    %322 = vdwg.mxu0
    %v324 = vsel %vm113, %v81, 0
    %v327 = vsel %vm113, %v82, 0
    %v330 = vsel %vm113, %v83, 0
    %v333 = vsel %vm113, %v84, 0
    %v336 = vsel %vm113, %v85, 0
    %v339 = vsel %vm113, %v86, 0
    %v342 = vsel %vm113, %v87, 0
    %v345 = vsel %vm113, %v88, 0
    %v348 = vsel %vm113, %v89, 0
    %v351 = vsel %vm113, %v90, 0
    %v354 = vsel %vm113, %v91, 0
    %v357 = vsel %vm113, %v92, 0
    %v360 = vsel %vm113, %v93, 0
    %v363 = vsel %vm113, %v94, 0
    %v366 = vsel %vm113, %v95, 0
    %v369 = vsel %vm113, %v96, 0
    %v372 = vsel %vm113, %v97, 0
    %v375 = vsel %vm113, %v98, 0
    %v378 = vsel %vm113, %v99, 0
    %v381 = vsel %vm113, %v100, 0
    %v384 = vsel %vm113, %v101, 0
    %v387 = vsel %vm113, %v102, 0
    %v390 = vsel %vm113, %v103, 0
    %v393 = vsel %vm113, %v104, 0
    %v396 = vsel %vm113, %v105, 0
    %v399 = vsel %vm113, %v106, 0
    %v402 = vsel %vm113, %v107, 0
    %v405 = vsel %vm113, %v108, 0
    %v408 = vsel %vm113, %v109, 0
    %v411 = vsel %vm113, %v110, 0
    %v414 = vsel %vm113, %v111, 0
    %v417 = vsel %vm113, %v112, 0
    %419 = vmatpush.msra.mxu0 0.0
    %420 = vmatpush.msra.mxu0 0.0
    %421 = vmatpush.msra.mxu0 0.0
    %422 = vmatpush.msra.mxu0 0.0
    %423 = vmatpush.msra.mxu0 0.0
    %424 = vmatpush.msra.mxu0 0.0
    %425 = vmatpush.msra.mxu0 0.0
    %426 = vmatpush.msra.mxu0 0.0
    %427 = vmatpush.msra.mxu0 %v48
    %428 = vmatpush.msra.mxu0 %v47
    %429 = vmatpush.msra.mxu0 %v46
    %430 = vmatpush.msra.mxu0 %v45
    %431 = vmatpush.msra.mxu0 %v44
    %432 = vmatpush.msra.mxu0 %v43
    %433 = vmatpush.msra.mxu0 %v42
    %434 = vmatpush.msra.mxu0 %v41
    %435 = vmatmul.f32.gmra.mxu0 %v324
    %v436 = vpop.f32.mrf.mxu0
    %v437 = vadd.f32 0.0, %v436
    %438 = vmatmul.f32.gmra.mxu0 %v327
    %v439 = vpop.f32.mrf.mxu0
    %v440 = vadd.f32 0.0, %v439
    %441 = vmatmul.f32.gmra.mxu0 %v330
    %v442 = vpop.f32.mrf.mxu0
    %v443 = vadd.f32 0.0, %v442
    %444 = vmatmul.f32.gmra.mxu0 %v333
    %v445 = vpop.f32.mrf.mxu0
    %v446 = vadd.f32 0.0, %v445
    %447 = vmatmul.f32.gmra.mxu0 %v336
    %v448 = vpop.f32.mrf.mxu0
    %v449 = vadd.f32 0.0, %v448
    %450 = vmatmul.f32.gmra.mxu0 %v339
    %v451 = vpop.f32.mrf.mxu0
    %v452 = vadd.f32 0.0, %v451
    %453 = vmatmul.f32.gmra.mxu0 %v342
    %v454 = vpop.f32.mrf.mxu0
    %v455 = vadd.f32 0.0, %v454
    %456 = vmatmul.f32.gmra.mxu0 %v345
    %v457 = vpop.f32.mrf.mxu0
    %v458 = vadd.f32 0.0, %v457
    %459 = vmatmul.f32.gmra.mxu0 %v348
    %v460 = vpop.f32.mrf.mxu0
    %v461 = vadd.f32 0.0, %v460
    %462 = vmatmul.f32.gmra.mxu0 %v351
    %v463 = vpop.f32.mrf.mxu0
    %v464 = vadd.f32 0.0, %v463
    %465 = vmatmul.f32.gmra.mxu0 %v354
    %v466 = vpop.f32.mrf.mxu0
    %v467 = vadd.f32 0.0, %v466
    %468 = vmatmul.f32.gmra.mxu0 %v357
    %v469 = vpop.f32.mrf.mxu0
    %v470 = vadd.f32 0.0, %v469
    %471 = vmatmul.f32.gmra.mxu0 %v360
    %v472 = vpop.f32.mrf.mxu0
    %v473 = vadd.f32 0.0, %v472
    %474 = vmatmul.f32.gmra.mxu0 %v363
    %v475 = vpop.f32.mrf.mxu0
    %v476 = vadd.f32 0.0, %v475
    %477 = vmatmul.f32.gmra.mxu0 %v366
    %v478 = vpop.f32.mrf.mxu0
    %v479 = vadd.f32 0.0, %v478
    %480 = vmatmul.f32.gmra.mxu0 %v369
    %v481 = vpop.f32.mrf.mxu0
    %v482 = vadd.f32 0.0, %v481
    %483 = vmatmul.f32.gmra.mxu0 %v372
    %v484 = vpop.f32.mrf.mxu0
    %v485 = vadd.f32 0.0, %v484
    %486 = vmatmul.f32.gmra.mxu0 %v375
    %v487 = vpop.f32.mrf.mxu0
    %v488 = vadd.f32 0.0, %v487
    %489 = vmatmul.f32.gmra.mxu0 %v378
    %v490 = vpop.f32.mrf.mxu0
    %v491 = vadd.f32 0.0, %v490
    %492 = vmatmul.f32.gmra.mxu0 %v381
    %v493 = vpop.f32.mrf.mxu0
    %v494 = vadd.f32 0.0, %v493
    %495 = vmatmul.f32.gmra.mxu0 %v384
    %v496 = vpop.f32.mrf.mxu0
    %v497 = vadd.f32 0.0, %v496
    %498 = vmatmul.f32.gmra.mxu0 %v387
    %v499 = vpop.f32.mrf.mxu0
    %v500 = vadd.f32 0.0, %v499
    %501 = vmatmul.f32.gmra.mxu0 %v390
    %v502 = vpop.f32.mrf.mxu0
    %v503 = vadd.f32 0.0, %v502
    %504 = vmatmul.f32.gmra.mxu0 %v393
    %v505 = vpop.f32.mrf.mxu0
    %v506 = vadd.f32 0.0, %v505
    %507 = vmatmul.f32.gmra.mxu0 %v396
    %v508 = vpop.f32.mrf.mxu0
    %v509 = vadd.f32 0.0, %v508
    %510 = vmatmul.f32.gmra.mxu0 %v399
    %v511 = vpop.f32.mrf.mxu0
    %v512 = vadd.f32 0.0, %v511
    %513 = vmatmul.f32.gmra.mxu0 %v402
    %v514 = vpop.f32.mrf.mxu0
    %v515 = vadd.f32 0.0, %v514
    %516 = vmatmul.f32.gmra.mxu0 %v405
    %v517 = vpop.f32.mrf.mxu0
    %v518 = vadd.f32 0.0, %v517
    %519 = vmatmul.f32.gmra.mxu0 %v408
    %v520 = vpop.f32.mrf.mxu0
    %v521 = vadd.f32 0.0, %v520
    %522 = vmatmul.f32.gmra.mxu0 %v411
    %v523 = vpop.f32.mrf.mxu0
    %v524 = vadd.f32 0.0, %v523
    %525 = vmatmul.f32.gmra.mxu0 %v414
    %v526 = vpop.f32.mrf.mxu0
    %v527 = vadd.f32 0.0, %v526
    %528 = vmatmul.f32.gmra.mxu0 %v417
    %v529 = vpop.f32.mrf.mxu0
    %v530 = vadd.f32 0.0, %v529
    %531 = vdwg.mxu0
    %v532 = vmul.f32 %v228, %v437
    %v533 = vmul.f32 %v231, %v440
    %v534 = vmul.f32 %v234, %v443
    %v535 = vmul.f32 %v237, %v446
    %v536 = vmul.f32 %v240, %v449
    %v537 = vmul.f32 %v243, %v452
    %v538 = vmul.f32 %v246, %v455
    %v539 = vmul.f32 %v249, %v458
    %v540 = vmul.f32 %v252, %v461
    %v541 = vmul.f32 %v255, %v464
    %v542 = vmul.f32 %v258, %v467
    %v543 = vmul.f32 %v261, %v470
    %v544 = vmul.f32 %v264, %v473
    %v545 = vmul.f32 %v267, %v476
    %v546 = vmul.f32 %v270, %v479
    %v547 = vmul.f32 %v273, %v482
    %v548 = vmul.f32 %v276, %v485
    %v549 = vmul.f32 %v279, %v488
    %v550 = vmul.f32 %v282, %v491
    %v551 = vmul.f32 %v285, %v494
    %v552 = vmul.f32 %v288, %v497
    %v553 = vmul.f32 %v291, %v500
    %v554 = vmul.f32 %v294, %v503
    %v555 = vmul.f32 %v297, %v506
    %v556 = vmul.f32 %v300, %v509
    %v557 = vmul.f32 %v303, %v512
    %v558 = vmul.f32 %v306, %v515
    %v559 = vmul.f32 %v309, %v518
    %v560 = vmul.f32 %v312, %v521
    %v561 = vmul.f32 %v315, %v524
    %v562 = vmul.f32 %v318, %v527
    %v563 = vmul.f32 %v321, %v530
    %v564 = vld [vmem:[%s3] sm:$0xff]
    %v565 = vld [vmem:[%s3 + $0x8] sm:$0xff]
    %v566 = vld [vmem:[%s3 + $0x10] sm:$0xff]
    %v567 = vld [vmem:[%s3 + $0x18] sm:$0xff]
    %v568 = vld [vmem:[%s3 + $0x20] sm:$0xff]
    %v569 = vld [vmem:[%s3 + $0x28] sm:$0xff]
    %v570 = vld [vmem:[%s3 + $0x30] sm:$0xff]
    %v571 = vld [vmem:[%s3 + $0x38] sm:$0xff]
    %v572 = vld [vmem:[%s3 + $0x40] sm:$0xff]
    %v573 = vld [vmem:[%s3 + $0x48] sm:$0xff]
    %v574 = vld [vmem:[%s3 + $0x50] sm:$0xff]
    %v575 = vld [vmem:[%s3 + $0x58] sm:$0xff]
    %v576 = vld [vmem:[%s3 + $0x60] sm:$0xff]
    %v577 = vld [vmem:[%s3 + $0x68] sm:$0xff]
    %v578 = vld [vmem:[%s3 + $0x70] sm:$0xff]
    %v579 = vld [vmem:[%s3 + $0x78] sm:$0xff]
    %v580 = vld [vmem:[%s3 + $0x80] sm:$0xff]
    %v581 = vld [vmem:[%s3 + $0x88] sm:$0xff]
    %v582 = vld [vmem:[%s3 + $0x90] sm:$0xff]
    %v583 = vld [vmem:[%s3 + $0x98] sm:$0xff]
    %v584 = vld [vmem:[%s3 + $0xa0] sm:$0xff]
    %v585 = vld [vmem:[%s3 + $0xa8] sm:$0xff]
    %v586 = vld [vmem:[%s3 + $0xb0] sm:$0xff]
    %v587 = vld [vmem:[%s3 + $0xb8] sm:$0xff]
    %v588 = vld [vmem:[%s3 + $0xc0] sm:$0xff]
    %v589 = vld [vmem:[%s3 + $0xc8] sm:$0xff]
    %v590 = vld [vmem:[%s3 + $0xd0] sm:$0xff]
    %v591 = vld [vmem:[%s3 + $0xd8] sm:$0xff]
    %v592 = vld [vmem:[%s3 + $0xe0] sm:$0xff]
    %v593 = vld [vmem:[%s3 + $0xe8] sm:$0xff]
    %v594 = vld [vmem:[%s3 + $0xf0] sm:$0xff]
    %v595 = vld [vmem:[%s3 + $0xf8] sm:$0xff]
    %v596 = vld [vmem:[%s4] sm:$0xff]
    %v597 = vld [vmem:[%s4 + $0x8] sm:$0xff]
    %v598 = vld [vmem:[%s4 + $0x10] sm:$0xff]
    %v599 = vld [vmem:[%s4 + $0x18] sm:$0xff]
    %v600 = vld [vmem:[%s4 + $0x20] sm:$0xff]
    %v601 = vld [vmem:[%s4 + $0x28] sm:$0xff]
    %v602 = vld [vmem:[%s4 + $0x30] sm:$0xff]
    %v603 = vld [vmem:[%s4 + $0x38] sm:$0xff]
    %v604 = vld [vmem:[%s4 + $0x40] sm:$0xff]
    %v605 = vld [vmem:[%s4 + $0x48] sm:$0xff]
    %v606 = vld [vmem:[%s4 + $0x50] sm:$0xff]
    %v607 = vld [vmem:[%s4 + $0x58] sm:$0xff]
    %v608 = vld [vmem:[%s4 + $0x60] sm:$0xff]
    %v609 = vld [vmem:[%s4 + $0x68] sm:$0xff]
    %v610 = vld [vmem:[%s4 + $0x70] sm:$0xff]
    %v611 = vld [vmem:[%s4 + $0x78] sm:$0xff]
    %613 = vset.pattern.permute.xlu0 0
    %614 = vperm.xlu0 %613, %v596
    %v615 = vpop.permute.xlu0 %614
    %618 = vset.pattern.permute.xlu0 0
    %619 = vperm.xlu0 %618, %v597
    %v620 = vpop.permute.xlu0 %619
    %623 = vset.pattern.permute.xlu0 0
    %624 = vperm.xlu0 %623, %v598
    %v625 = vpop.permute.xlu0 %624
    %628 = vset.pattern.permute.xlu0 0
    %629 = vperm.xlu0 %628, %v599
    %v630 = vpop.permute.xlu0 %629
    %633 = vset.pattern.permute.xlu0 0
    %634 = vperm.xlu0 %633, %v600
    %v635 = vpop.permute.xlu0 %634
    %638 = vset.pattern.permute.xlu0 0
    %639 = vperm.xlu0 %638, %v601
    %v640 = vpop.permute.xlu0 %639
    %643 = vset.pattern.permute.xlu0 0
    %644 = vperm.xlu0 %643, %v602
    %v645 = vpop.permute.xlu0 %644
    %648 = vset.pattern.permute.xlu0 0
    %649 = vperm.xlu0 %648, %v603
    %v650 = vpop.permute.xlu0 %649
    %653 = vset.pattern.permute.xlu0 0
    %654 = vperm.xlu0 %653, %v604
    %v655 = vpop.permute.xlu0 %654
    %658 = vset.pattern.permute.xlu0 0
    %659 = vperm.xlu0 %658, %v605
    %v660 = vpop.permute.xlu0 %659
    %663 = vset.pattern.permute.xlu0 0
    %664 = vperm.xlu0 %663, %v606
    %v665 = vpop.permute.xlu0 %664
    %668 = vset.pattern.permute.xlu0 0
    %669 = vperm.xlu0 %668, %v607
    %v670 = vpop.permute.xlu0 %669
    %673 = vset.pattern.permute.xlu0 0
    %674 = vperm.xlu0 %673, %v608
    %v675 = vpop.permute.xlu0 %674
    %678 = vset.pattern.permute.xlu0 0
    %679 = vperm.xlu0 %678, %v609
    %v680 = vpop.permute.xlu0 %679
    %683 = vset.pattern.permute.xlu0 0
    %684 = vperm.xlu0 %683, %v610
    %v685 = vpop.permute.xlu0 %684
    %688 = vset.pattern.permute.xlu0 0
    %689 = vperm.xlu0 %688, %v611
    %v690 = vpop.permute.xlu0 %689
    %692 = vmatpush.msra.mxu0 %v547
    %693 = vmatpush.msra.mxu0 %v546
    %694 = vmatpush.msra.mxu0 %v545
    %695 = vmatpush.msra.mxu0 %v544
    %696 = vmatpush.msra.mxu0 %v543
    %697 = vmatpush.msra.mxu0 %v542
    %698 = vmatpush.msra.mxu0 %v541
    %699 = vmatpush.msra.mxu0 %v540
    %700 = vmatpush.msra.mxu0 %v539
    %701 = vmatpush.msra.mxu0 %v538
    %702 = vmatpush.msra.mxu0 %v537
    %703 = vmatpush.msra.mxu0 %v536
    %704 = vmatpush.msra.mxu0 %v535
    %705 = vmatpush.msra.mxu0 %v534
    %706 = vmatpush.msra.mxu0 %v533
    %707 = vmatpush.msra.mxu0 %v532
    %708 = vmatmul.f32.gmra.mxu0 %v564
    %v709 = vpop.f32.mrf.mxu0
    %v710 = vadd.f32 %v615, %v709
    %711 = vmatmul.f32.gmra.mxu0 %v566
    %v712 = vpop.f32.mrf.mxu0
    %v713 = vadd.f32 %v620, %v712
    %714 = vmatmul.f32.gmra.mxu0 %v568
    %v715 = vpop.f32.mrf.mxu0
    %v716 = vadd.f32 %v625, %v715
    %717 = vmatmul.f32.gmra.mxu0 %v570
    %v718 = vpop.f32.mrf.mxu0
    %v719 = vadd.f32 %v630, %v718
    %720 = vmatmul.f32.gmra.mxu0 %v572
    %v721 = vpop.f32.mrf.mxu0
    %v722 = vadd.f32 %v635, %v721
    %723 = vmatmul.f32.gmra.mxu0 %v574
    %v724 = vpop.f32.mrf.mxu0
    %v725 = vadd.f32 %v640, %v724
    %726 = vmatmul.f32.gmra.mxu0 %v576
    %v727 = vpop.f32.mrf.mxu0
    %v728 = vadd.f32 %v645, %v727
    %729 = vmatmul.f32.gmra.mxu0 %v578
    %v730 = vpop.f32.mrf.mxu0
    %v731 = vadd.f32 %v650, %v730
    %732 = vmatmul.f32.gmra.mxu0 %v580
    %v733 = vpop.f32.mrf.mxu0
    %v734 = vadd.f32 %v655, %v733
    %735 = vmatmul.f32.gmra.mxu0 %v582
    %v736 = vpop.f32.mrf.mxu0
    %v737 = vadd.f32 %v660, %v736
    %738 = vmatmul.f32.gmra.mxu0 %v584
    %v739 = vpop.f32.mrf.mxu0
    %v740 = vadd.f32 %v665, %v739
    %741 = vmatmul.f32.gmra.mxu0 %v586
    %v742 = vpop.f32.mrf.mxu0
    %v743 = vadd.f32 %v670, %v742
    %744 = vmatmul.f32.gmra.mxu0 %v588
    %v745 = vpop.f32.mrf.mxu0
    %v746 = vadd.f32 %v675, %v745
    %747 = vmatmul.f32.gmra.mxu0 %v590
    %v748 = vpop.f32.mrf.mxu0
    %v749 = vadd.f32 %v680, %v748
    %750 = vmatmul.f32.gmra.mxu0 %v592
    %v751 = vpop.f32.mrf.mxu0
    %v752 = vadd.f32 %v685, %v751
    %753 = vmatmul.f32.gmra.mxu0 %v594
    %v754 = vpop.f32.mrf.mxu0
    %v755 = vadd.f32 %v690, %v754
    %756 = vdwg.mxu0
    %757 = vmatpush.msra.mxu0 %v563
    %758 = vmatpush.msra.mxu0 %v562
    %759 = vmatpush.msra.mxu0 %v561
    %760 = vmatpush.msra.mxu0 %v560
    %761 = vmatpush.msra.mxu0 %v559
    %762 = vmatpush.msra.mxu0 %v558
    %763 = vmatpush.msra.mxu0 %v557
    %764 = vmatpush.msra.mxu0 %v556
    %765 = vmatpush.msra.mxu0 %v555
    %766 = vmatpush.msra.mxu0 %v554
    %767 = vmatpush.msra.mxu0 %v553
    %768 = vmatpush.msra.mxu0 %v552
    %769 = vmatpush.msra.mxu0 %v551
    %770 = vmatpush.msra.mxu0 %v550
    %771 = vmatpush.msra.mxu0 %v549
    %772 = vmatpush.msra.mxu0 %v548
    %773 = vmatmul.f32.gmra.mxu0 %v565
    %v774 = vpop.f32.mrf.mxu0
    %v775 = vadd.f32 %v710, %v774
    %776 = vmatmul.f32.gmra.mxu0 %v567
    %v777 = vpop.f32.mrf.mxu0
    %v778 = vadd.f32 %v713, %v777
    %779 = vmatmul.f32.gmra.mxu0 %v569
    %v780 = vpop.f32.mrf.mxu0
    %v781 = vadd.f32 %v716, %v780
    %782 = vmatmul.f32.gmra.mxu0 %v571
    %v783 = vpop.f32.mrf.mxu0
    %v784 = vadd.f32 %v719, %v783
    %785 = vmatmul.f32.gmra.mxu0 %v573
    %v786 = vpop.f32.mrf.mxu0
    %v787 = vadd.f32 %v722, %v786
    %788 = vmatmul.f32.gmra.mxu0 %v575
    %v789 = vpop.f32.mrf.mxu0
    %v790 = vadd.f32 %v725, %v789
    %791 = vmatmul.f32.gmra.mxu0 %v577
    %v792 = vpop.f32.mrf.mxu0
    %v793 = vadd.f32 %v728, %v792
    %794 = vmatmul.f32.gmra.mxu0 %v579
    %v795 = vpop.f32.mrf.mxu0
    %v796 = vadd.f32 %v731, %v795
    %797 = vmatmul.f32.gmra.mxu0 %v581
    %v798 = vpop.f32.mrf.mxu0
    %v799 = vadd.f32 %v734, %v798
    %800 = vmatmul.f32.gmra.mxu0 %v583
    %v801 = vpop.f32.mrf.mxu0
    %v802 = vadd.f32 %v737, %v801
    %803 = vmatmul.f32.gmra.mxu0 %v585
    %v804 = vpop.f32.mrf.mxu0
    %v805 = vadd.f32 %v740, %v804
    %806 = vmatmul.f32.gmra.mxu0 %v587
    %v807 = vpop.f32.mrf.mxu0
    %v808 = vadd.f32 %v743, %v807
    %809 = vmatmul.f32.gmra.mxu0 %v589
    %v810 = vpop.f32.mrf.mxu0
    %v811 = vadd.f32 %v746, %v810
    %812 = vmatmul.f32.gmra.mxu0 %v591
    %v813 = vpop.f32.mrf.mxu0
    %v814 = vadd.f32 %v749, %v813
    %815 = vmatmul.f32.gmra.mxu0 %v593
    %v816 = vpop.f32.mrf.mxu0
    %v817 = vadd.f32 %v752, %v816
    %818 = vmatmul.f32.gmra.mxu0 %v595
    %v819 = vpop.f32.mrf.mxu0
    %v820 = vadd.f32 %v755, %v819
    %821 = vdwg.mxu0
    %v822 = vmax.f32 %v775, 0.0
    %v823 = vmax.f32 %v778, 0.0
    %v824 = vmax.f32 %v781, 0.0
    %v825 = vmax.f32 %v784, 0.0
    %v826 = vmax.f32 %v787, 0.0
    %v827 = vmax.f32 %v790, 0.0
    %v828 = vmax.f32 %v793, 0.0
    %v829 = vmax.f32 %v796, 0.0
    %v830 = vmax.f32 %v799, 0.0
    %v831 = vmax.f32 %v802, 0.0
    %v832 = vmax.f32 %v805, 0.0
    %v833 = vmax.f32 %v808, 0.0
    %v834 = vmax.f32 %v811, 0.0
    %v835 = vmax.f32 %v814, 0.0
    %v836 = vmax.f32 %v817, 0.0
    %v837 = vmax.f32 %v820, 0.0
    %838 = vmatpush.msra.mxu0 0.0
    %839 = vmatpush.msra.mxu0 0.0
    %840 = vmatpush.msra.mxu0 0.0
    %841 = vmatpush.msra.mxu0 0.0
    %842 = vmatpush.msra.mxu0 0.0
    %843 = vmatpush.msra.mxu0 0.0
    %844 = vmatpush.msra.mxu0 0.0
    %845 = vmatpush.msra.mxu0 0.0
    %846 = vmatpush.msra.mxu0 %v837
    %847 = vmatpush.msra.mxu0 %v836
    %848 = vmatpush.msra.mxu0 %v835
    %849 = vmatpush.msra.mxu0 %v834
    %850 = vmatpush.msra.mxu0 %v833
    %851 = vmatpush.msra.mxu0 %v832
    %852 = vmatpush.msra.mxu0 %v831
    %853 = vmatpush.msra.mxu0 %v830
    %854 = vmatmul.f32.gmra.mxu0 %v324
    %v855 = vpop.f32.mrf.mxu0
    %v856 = vadd.f32 0.0, %v855
    %857 = vmatmul.f32.gmra.mxu0 %v327
    %v858 = vpop.f32.mrf.mxu0
    %v859 = vadd.f32 0.0, %v858
    %860 = vmatmul.f32.gmra.mxu0 %v330
    %v861 = vpop.f32.mrf.mxu0
    %v862 = vadd.f32 0.0, %v861
    %863 = vmatmul.f32.gmra.mxu0 %v333
    %v864 = vpop.f32.mrf.mxu0
    %v865 = vadd.f32 0.0, %v864
    %866 = vmatmul.f32.gmra.mxu0 %v336
    %v867 = vpop.f32.mrf.mxu0
    %v868 = vadd.f32 0.0, %v867
    %869 = vmatmul.f32.gmra.mxu0 %v339
    %v870 = vpop.f32.mrf.mxu0
    %v871 = vadd.f32 0.0, %v870
    %872 = vmatmul.f32.gmra.mxu0 %v342
    %v873 = vpop.f32.mrf.mxu0
    %v874 = vadd.f32 0.0, %v873
    %875 = vmatmul.f32.gmra.mxu0 %v345
    %v876 = vpop.f32.mrf.mxu0
    %v877 = vadd.f32 0.0, %v876
    %878 = vmatmul.f32.gmra.mxu0 %v348
    %v879 = vpop.f32.mrf.mxu0
    %v880 = vadd.f32 0.0, %v879
    %881 = vmatmul.f32.gmra.mxu0 %v351
    %v882 = vpop.f32.mrf.mxu0
    %v883 = vadd.f32 0.0, %v882
    %884 = vmatmul.f32.gmra.mxu0 %v354
    %v885 = vpop.f32.mrf.mxu0
    %v886 = vadd.f32 0.0, %v885
    %887 = vmatmul.f32.gmra.mxu0 %v357
    %v888 = vpop.f32.mrf.mxu0
    %v889 = vadd.f32 0.0, %v888
    %890 = vmatmul.f32.gmra.mxu0 %v360
    %v891 = vpop.f32.mrf.mxu0
    %v892 = vadd.f32 0.0, %v891
    %893 = vmatmul.f32.gmra.mxu0 %v363
    %v894 = vpop.f32.mrf.mxu0
    %v895 = vadd.f32 0.0, %v894
    %896 = vmatmul.f32.gmra.mxu0 %v366
    %v897 = vpop.f32.mrf.mxu0
    %v898 = vadd.f32 0.0, %v897
    %899 = vmatmul.f32.gmra.mxu0 %v369
    %v900 = vpop.f32.mrf.mxu0
    %v901 = vadd.f32 0.0, %v900
    %902 = vmatmul.f32.gmra.mxu0 %v372
    %v903 = vpop.f32.mrf.mxu0
    %v904 = vadd.f32 0.0, %v903
    %905 = vmatmul.f32.gmra.mxu0 %v375
    %v906 = vpop.f32.mrf.mxu0
    %v907 = vadd.f32 0.0, %v906
    %908 = vmatmul.f32.gmra.mxu0 %v378
    %v909 = vpop.f32.mrf.mxu0
    %v910 = vadd.f32 0.0, %v909
    %911 = vmatmul.f32.gmra.mxu0 %v381
    %v912 = vpop.f32.mrf.mxu0
    %v913 = vadd.f32 0.0, %v912
    %914 = vmatmul.f32.gmra.mxu0 %v384
    %v915 = vpop.f32.mrf.mxu0
    %v916 = vadd.f32 0.0, %v915
    %917 = vmatmul.f32.gmra.mxu0 %v387
    %v918 = vpop.f32.mrf.mxu0
    %v919 = vadd.f32 0.0, %v918
    %920 = vmatmul.f32.gmra.mxu0 %v390
    %v921 = vpop.f32.mrf.mxu0
    %v922 = vadd.f32 0.0, %v921
    %923 = vmatmul.f32.gmra.mxu0 %v393
    %v924 = vpop.f32.mrf.mxu0
    %v925 = vadd.f32 0.0, %v924
    %926 = vmatmul.f32.gmra.mxu0 %v396
    %v927 = vpop.f32.mrf.mxu0
    %v928 = vadd.f32 0.0, %v927
    %929 = vmatmul.f32.gmra.mxu0 %v399
    %v930 = vpop.f32.mrf.mxu0
    %v931 = vadd.f32 0.0, %v930
    %932 = vmatmul.f32.gmra.mxu0 %v402
    %v933 = vpop.f32.mrf.mxu0
    %v934 = vadd.f32 0.0, %v933
    %935 = vmatmul.f32.gmra.mxu0 %v405
    %v936 = vpop.f32.mrf.mxu0
    %v937 = vadd.f32 0.0, %v936
    %938 = vmatmul.f32.gmra.mxu0 %v408
    %v939 = vpop.f32.mrf.mxu0
    %v940 = vadd.f32 0.0, %v939
    %941 = vmatmul.f32.gmra.mxu0 %v411
    %v942 = vpop.f32.mrf.mxu0
    %v943 = vadd.f32 0.0, %v942
    %944 = vmatmul.f32.gmra.mxu0 %v414
    %v945 = vpop.f32.mrf.mxu0
    %v946 = vadd.f32 0.0, %v945
    %947 = vmatmul.f32.gmra.mxu0 %v417
    %v948 = vpop.f32.mrf.mxu0
    %v949 = vadd.f32 0.0, %v948
    %950 = vdwg.mxu0
    %v951 = vmul.f32 %v228, %v856
    %v952 = vmul.f32 %v231, %v859
    %v953 = vmul.f32 %v234, %v862
    %v954 = vmul.f32 %v237, %v865
    %v955 = vmul.f32 %v240, %v868
    %v956 = vmul.f32 %v243, %v871
    %v957 = vmul.f32 %v246, %v874
    %v958 = vmul.f32 %v249, %v877
    %v959 = vmul.f32 %v252, %v880
    %v960 = vmul.f32 %v255, %v883
    %v961 = vmul.f32 %v258, %v886
    %v962 = vmul.f32 %v261, %v889
    %v963 = vmul.f32 %v264, %v892
    %v964 = vmul.f32 %v267, %v895
    %v965 = vmul.f32 %v270, %v898
    %v966 = vmul.f32 %v273, %v901
    %v967 = vmul.f32 %v276, %v904
    %v968 = vmul.f32 %v279, %v907
    %v969 = vmul.f32 %v282, %v910
    %v970 = vmul.f32 %v285, %v913
    %v971 = vmul.f32 %v288, %v916
    %v972 = vmul.f32 %v291, %v919
    %v973 = vmul.f32 %v294, %v922
    %v974 = vmul.f32 %v297, %v925
    %v975 = vmul.f32 %v300, %v928
    %v976 = vmul.f32 %v303, %v931
    %v977 = vmul.f32 %v306, %v934
    %v978 = vmul.f32 %v309, %v937
    %v979 = vmul.f32 %v312, %v940
    %v980 = vmul.f32 %v315, %v943
    %v981 = vmul.f32 %v318, %v946
    %v982 = vmul.f32 %v321, %v949
    %v983 = vld [vmem:[%s3 + $0x100] sm:$0xff]
    %v984 = vld [vmem:[%s3 + $0x108] sm:$0xff]
    %v985 = vld [vmem:[%s3 + $0x110] sm:$0xff]
    %v986 = vld [vmem:[%s3 + $0x118] sm:$0xff]
    %v987 = vld [vmem:[%s3 + $0x120] sm:$0xff]
    %v988 = vld [vmem:[%s3 + $0x128] sm:$0xff]
    %v989 = vld [vmem:[%s3 + $0x130] sm:$0xff]
    %v990 = vld [vmem:[%s3 + $0x138] sm:$0xff]
    %v991 = vld [vmem:[%s3 + $0x140] sm:$0xff]
    %v992 = vld [vmem:[%s3 + $0x148] sm:$0xff]
    %v993 = vld [vmem:[%s3 + $0x150] sm:$0xff]
    %v994 = vld [vmem:[%s3 + $0x158] sm:$0xff]
    %v995 = vld [vmem:[%s3 + $0x160] sm:$0xff]
    %v996 = vld [vmem:[%s3 + $0x168] sm:$0xff]
    %v997 = vld [vmem:[%s3 + $0x170] sm:$0xff]
    %v998 = vld [vmem:[%s3 + $0x178] sm:$0xff]
    %v999 = vld [vmem:[%s3 + $0x180] sm:$0xff]
    %v1000 = vld [vmem:[%s3 + $0x188] sm:$0xff]
    %v1001 = vld [vmem:[%s3 + $0x190] sm:$0xff]
    %v1002 = vld [vmem:[%s3 + $0x198] sm:$0xff]
    %v1003 = vld [vmem:[%s3 + $0x1a0] sm:$0xff]
    %v1004 = vld [vmem:[%s3 + $0x1a8] sm:$0xff]
    %v1005 = vld [vmem:[%s3 + $0x1b0] sm:$0xff]
    %v1006 = vld [vmem:[%s3 + $0x1b8] sm:$0xff]
    %v1007 = vld [vmem:[%s3 + $0x1c0] sm:$0xff]
    %v1008 = vld [vmem:[%s3 + $0x1c8] sm:$0xff]
    %v1009 = vld [vmem:[%s3 + $0x1d0] sm:$0xff]
    %v1010 = vld [vmem:[%s3 + $0x1d8] sm:$0xff]
    %v1011 = vld [vmem:[%s3 + $0x1e0] sm:$0xff]
    %v1012 = vld [vmem:[%s3 + $0x1e8] sm:$0xff]
    %v1013 = vld [vmem:[%s3 + $0x1f0] sm:$0xff]
    %v1014 = vld [vmem:[%s3 + $0x1f8] sm:$0xff]
    %v1015 = vld [vmem:[%s4 + $0x80] sm:$0xff]
    %v1016 = vld [vmem:[%s4 + $0x88] sm:$0xff]
    %v1017 = vld [vmem:[%s4 + $0x90] sm:$0xff]
    %v1018 = vld [vmem:[%s4 + $0x98] sm:$0xff]
    %v1019 = vld [vmem:[%s4 + $0xa0] sm:$0xff]
    %v1020 = vld [vmem:[%s4 + $0xa8] sm:$0xff]
    %v1021 = vld [vmem:[%s4 + $0xb0] sm:$0xff]
    %v1022 = vld [vmem:[%s4 + $0xb8] sm:$0xff]
    %v1023 = vld [vmem:[%s4 + $0xc0] sm:$0xff]
    %v1024 = vld [vmem:[%s4 + $0xc8] sm:$0xff]
    %v1025 = vld [vmem:[%s4 + $0xd0] sm:$0xff]
    %v1026 = vld [vmem:[%s4 + $0xd8] sm:$0xff]
    %v1027 = vld [vmem:[%s4 + $0xe0] sm:$0xff]
    %v1028 = vld [vmem:[%s4 + $0xe8] sm:$0xff]
    %v1029 = vld [vmem:[%s4 + $0xf0] sm:$0xff]
    %v1030 = vld [vmem:[%s4 + $0xf8] sm:$0xff]
    %1032 = vset.pattern.permute.xlu0 0
    %1033 = vperm.xlu0 %1032, %v1015
    %v1034 = vpop.permute.xlu0 %1033
    %1037 = vset.pattern.permute.xlu0 0
    %1038 = vperm.xlu0 %1037, %v1016
    %v1039 = vpop.permute.xlu0 %1038
    %1042 = vset.pattern.permute.xlu0 0
    %1043 = vperm.xlu0 %1042, %v1017
    %v1044 = vpop.permute.xlu0 %1043
    %1047 = vset.pattern.permute.xlu0 0
    %1048 = vperm.xlu0 %1047, %v1018
    %v1049 = vpop.permute.xlu0 %1048
    %1052 = vset.pattern.permute.xlu0 0
    %1053 = vperm.xlu0 %1052, %v1019
    %v1054 = vpop.permute.xlu0 %1053
    %1057 = vset.pattern.permute.xlu0 0
    %1058 = vperm.xlu0 %1057, %v1020
    %v1059 = vpop.permute.xlu0 %1058
    %1062 = vset.pattern.permute.xlu0 0
    %1063 = vperm.xlu0 %1062, %v1021
    %v1064 = vpop.permute.xlu0 %1063
    %1067 = vset.pattern.permute.xlu0 0
    %1068 = vperm.xlu0 %1067, %v1022
    %v1069 = vpop.permute.xlu0 %1068
    %1072 = vset.pattern.permute.xlu0 0
    %1073 = vperm.xlu0 %1072, %v1023
    %v1074 = vpop.permute.xlu0 %1073
    %1077 = vset.pattern.permute.xlu0 0
    %1078 = vperm.xlu0 %1077, %v1024
    %v1079 = vpop.permute.xlu0 %1078
    %1082 = vset.pattern.permute.xlu0 0
    %1083 = vperm.xlu0 %1082, %v1025
    %v1084 = vpop.permute.xlu0 %1083
    %1087 = vset.pattern.permute.xlu0 0
    %1088 = vperm.xlu0 %1087, %v1026
    %v1089 = vpop.permute.xlu0 %1088
    %1092 = vset.pattern.permute.xlu0 0
    %1093 = vperm.xlu0 %1092, %v1027
    %v1094 = vpop.permute.xlu0 %1093
    %1097 = vset.pattern.permute.xlu0 0
    %1098 = vperm.xlu0 %1097, %v1028
    %v1099 = vpop.permute.xlu0 %1098
    %1102 = vset.pattern.permute.xlu0 0
    %1103 = vperm.xlu0 %1102, %v1029
    %v1104 = vpop.permute.xlu0 %1103
    %1107 = vset.pattern.permute.xlu0 0
    %1108 = vperm.xlu0 %1107, %v1030
    %v1109 = vpop.permute.xlu0 %1108
    %1111 = vmatpush.msra.mxu0 %v966
    %1112 = vmatpush.msra.mxu0 %v965
    %1113 = vmatpush.msra.mxu0 %v964
    %1114 = vmatpush.msra.mxu0 %v963
    %1115 = vmatpush.msra.mxu0 %v962
    %1116 = vmatpush.msra.mxu0 %v961
    %1117 = vmatpush.msra.mxu0 %v960
    %1118 = vmatpush.msra.mxu0 %v959
    %1119 = vmatpush.msra.mxu0 %v958
    %1120 = vmatpush.msra.mxu0 %v957
    %1121 = vmatpush.msra.mxu0 %v956
    %1122 = vmatpush.msra.mxu0 %v955
    %1123 = vmatpush.msra.mxu0 %v954
    %1124 = vmatpush.msra.mxu0 %v953
    %1125 = vmatpush.msra.mxu0 %v952
    %1126 = vmatpush.msra.mxu0 %v951
    %1127 = vmatmul.f32.gmra.mxu0 %v983
    %v1128 = vpop.f32.mrf.mxu0
    %v1129 = vadd.f32 %v1034, %v1128
    %1130 = vmatmul.f32.gmra.mxu0 %v985
    %v1131 = vpop.f32.mrf.mxu0
    %v1132 = vadd.f32 %v1039, %v1131
    %1133 = vmatmul.f32.gmra.mxu0 %v987
    %v1134 = vpop.f32.mrf.mxu0
    %v1135 = vadd.f32 %v1044, %v1134
    %1136 = vmatmul.f32.gmra.mxu0 %v989
    %v1137 = vpop.f32.mrf.mxu0
    %v1138 = vadd.f32 %v1049, %v1137
    %1139 = vmatmul.f32.gmra.mxu0 %v991
    %v1140 = vpop.f32.mrf.mxu0
    %v1141 = vadd.f32 %v1054, %v1140
    %1142 = vmatmul.f32.gmra.mxu0 %v993
    %v1143 = vpop.f32.mrf.mxu0
    %v1144 = vadd.f32 %v1059, %v1143
    %1145 = vmatmul.f32.gmra.mxu0 %v995
    %v1146 = vpop.f32.mrf.mxu0
    %v1147 = vadd.f32 %v1064, %v1146
    %1148 = vmatmul.f32.gmra.mxu0 %v997
    %v1149 = vpop.f32.mrf.mxu0
    %v1150 = vadd.f32 %v1069, %v1149
    %1151 = vmatmul.f32.gmra.mxu0 %v999
    %v1152 = vpop.f32.mrf.mxu0
    %v1153 = vadd.f32 %v1074, %v1152
    %1154 = vmatmul.f32.gmra.mxu0 %v1001
    %v1155 = vpop.f32.mrf.mxu0
    %v1156 = vadd.f32 %v1079, %v1155
    %1157 = vmatmul.f32.gmra.mxu0 %v1003
    %v1158 = vpop.f32.mrf.mxu0
    %v1159 = vadd.f32 %v1084, %v1158
    %1160 = vmatmul.f32.gmra.mxu0 %v1005
    %v1161 = vpop.f32.mrf.mxu0
    %v1162 = vadd.f32 %v1089, %v1161
    %1163 = vmatmul.f32.gmra.mxu0 %v1007
    %v1164 = vpop.f32.mrf.mxu0
    %v1165 = vadd.f32 %v1094, %v1164
    %1166 = vmatmul.f32.gmra.mxu0 %v1009
    %v1167 = vpop.f32.mrf.mxu0
    %v1168 = vadd.f32 %v1099, %v1167
    %1169 = vmatmul.f32.gmra.mxu0 %v1011
    %v1170 = vpop.f32.mrf.mxu0
    %v1171 = vadd.f32 %v1104, %v1170
    %1172 = vmatmul.f32.gmra.mxu0 %v1013
    %v1173 = vpop.f32.mrf.mxu0
    %v1174 = vadd.f32 %v1109, %v1173
    %1175 = vdwg.mxu0
    %1176 = vmatpush.msra.mxu0 %v982
    %1177 = vmatpush.msra.mxu0 %v981
    %1178 = vmatpush.msra.mxu0 %v980
    %1179 = vmatpush.msra.mxu0 %v979
    %1180 = vmatpush.msra.mxu0 %v978
    %1181 = vmatpush.msra.mxu0 %v977
    %1182 = vmatpush.msra.mxu0 %v976
    %1183 = vmatpush.msra.mxu0 %v975
    %1184 = vmatpush.msra.mxu0 %v974
    %1185 = vmatpush.msra.mxu0 %v973
    %1186 = vmatpush.msra.mxu0 %v972
    %1187 = vmatpush.msra.mxu0 %v971
    %1188 = vmatpush.msra.mxu0 %v970
    %1189 = vmatpush.msra.mxu0 %v969
    %1190 = vmatpush.msra.mxu0 %v968
    %1191 = vmatpush.msra.mxu0 %v967
    %1192 = vmatmul.f32.gmra.mxu0 %v984
    %v1193 = vpop.f32.mrf.mxu0
    %v1194 = vadd.f32 %v1129, %v1193
    %1195 = vmatmul.f32.gmra.mxu0 %v986
    %v1196 = vpop.f32.mrf.mxu0
    %v1197 = vadd.f32 %v1132, %v1196
    %1198 = vmatmul.f32.gmra.mxu0 %v988
    %v1199 = vpop.f32.mrf.mxu0
    %v1200 = vadd.f32 %v1135, %v1199
    %1201 = vmatmul.f32.gmra.mxu0 %v990
    %v1202 = vpop.f32.mrf.mxu0
    %v1203 = vadd.f32 %v1138, %v1202
    %1204 = vmatmul.f32.gmra.mxu0 %v992
    %v1205 = vpop.f32.mrf.mxu0
    %v1206 = vadd.f32 %v1141, %v1205
    %1207 = vmatmul.f32.gmra.mxu0 %v994
    %v1208 = vpop.f32.mrf.mxu0
    %v1209 = vadd.f32 %v1144, %v1208
    %1210 = vmatmul.f32.gmra.mxu0 %v996
    %v1211 = vpop.f32.mrf.mxu0
    %v1212 = vadd.f32 %v1147, %v1211
    %1213 = vmatmul.f32.gmra.mxu0 %v998
    %v1214 = vpop.f32.mrf.mxu0
    %v1215 = vadd.f32 %v1150, %v1214
    %1216 = vmatmul.f32.gmra.mxu0 %v1000
    %v1217 = vpop.f32.mrf.mxu0
    %v1218 = vadd.f32 %v1153, %v1217
    %1219 = vmatmul.f32.gmra.mxu0 %v1002
    %v1220 = vpop.f32.mrf.mxu0
    %v1221 = vadd.f32 %v1156, %v1220
    %1222 = vmatmul.f32.gmra.mxu0 %v1004
    %v1223 = vpop.f32.mrf.mxu0
    %v1224 = vadd.f32 %v1159, %v1223
    %1225 = vmatmul.f32.gmra.mxu0 %v1006
    %v1226 = vpop.f32.mrf.mxu0
    %v1227 = vadd.f32 %v1162, %v1226
    %1228 = vmatmul.f32.gmra.mxu0 %v1008
    %v1229 = vpop.f32.mrf.mxu0
    %v1230 = vadd.f32 %v1165, %v1229
    %1231 = vmatmul.f32.gmra.mxu0 %v1010
    %v1232 = vpop.f32.mrf.mxu0
    %v1233 = vadd.f32 %v1168, %v1232
    %1234 = vmatmul.f32.gmra.mxu0 %v1012
    %v1235 = vpop.f32.mrf.mxu0
    %v1236 = vadd.f32 %v1171, %v1235
    %1237 = vmatmul.f32.gmra.mxu0 %v1014
    %v1238 = vpop.f32.mrf.mxu0
    %v1239 = vadd.f32 %v1174, %v1238
    %1240 = vdwg.mxu0
    %v1241 = vmax.f32 %v1194, 0.0
    %v1242 = vmax.f32 %v1197, 0.0
    %v1243 = vmax.f32 %v1200, 0.0
    %v1244 = vmax.f32 %v1203, 0.0
    %v1245 = vmax.f32 %v1206, 0.0
    %v1246 = vmax.f32 %v1209, 0.0
    %v1247 = vmax.f32 %v1212, 0.0
    %v1248 = vmax.f32 %v1215, 0.0
    %v1249 = vmax.f32 %v1218, 0.0
    %v1250 = vmax.f32 %v1221, 0.0
    %v1251 = vmax.f32 %v1224, 0.0
    %v1252 = vmax.f32 %v1227, 0.0
    %v1253 = vmax.f32 %v1230, 0.0
    %v1254 = vmax.f32 %v1233, 0.0
    %v1255 = vmax.f32 %v1236, 0.0
    %v1256 = vmax.f32 %v1239, 0.0
    %v1257 = vld [vmem:[%s8] sm:$0x1]
    %v1258 = vld [vmem:[%s8 + $0x2] sm:$0x1]
    %1259 = vmatpush.msra.mxu0 %v1256
    %1260 = vmatpush.msra.mxu0 %v1255
    %1261 = vmatpush.msra.mxu0 %v1254
    %1262 = vmatpush.msra.mxu0 %v1253
    %1263 = vmatpush.msra.mxu0 %v1252
    %1264 = vmatpush.msra.mxu0 %v1251
    %1265 = vmatpush.msra.mxu0 %v1250
    %1266 = vmatpush.msra.mxu0 %v1249
    %1267 = vmatpush.msra.mxu0 %v1248
    %1268 = vmatpush.msra.mxu0 %v1247
    %1269 = vmatpush.msra.mxu0 %v1246
    %1270 = vmatpush.msra.mxu0 %v1245
    %1271 = vmatpush.msra.mxu0 %v1244
    %1272 = vmatpush.msra.mxu0 %v1243
    %1273 = vmatpush.msra.mxu0 %v1242
    %1274 = vmatpush.msra.mxu0 %v1241
    %1275 = vmatmul.f32.gmra.mxu0 %v1258
    %v1276 = vpop.f32.mrf.mxu0
    %v1277 = vadd.f32 0.0, %v1276
    %1278 = vdwg.mxu0
    %1279 = vmatpush.msra.mxu0 %v837
    %1280 = vmatpush.msra.mxu0 %v836
    %1281 = vmatpush.msra.mxu0 %v835
    %1282 = vmatpush.msra.mxu0 %v834
    %1283 = vmatpush.msra.mxu0 %v833
    %1284 = vmatpush.msra.mxu0 %v832
    %1285 = vmatpush.msra.mxu0 %v831
    %1286 = vmatpush.msra.mxu0 %v830
    %1287 = vmatpush.msra.mxu0 %v829
    %1288 = vmatpush.msra.mxu0 %v828
    %1289 = vmatpush.msra.mxu0 %v827
    %1290 = vmatpush.msra.mxu0 %v826
    %1291 = vmatpush.msra.mxu0 %v825
    %1292 = vmatpush.msra.mxu0 %v824
    %1293 = vmatpush.msra.mxu0 %v823
    %1294 = vmatpush.msra.mxu0 %v822
    %1295 = vmatmul.f32.gmra.mxu0 %v1257
    %v1296 = vpop.f32.mrf.mxu0
    %v1297 = vadd.f32 %v1277, %v1296
    %1298 = vdwg.mxu0
    %v1299 = vld [vmem:[%s5] sm:$0xff]
    %v1300 = vld [vmem:[%s5 + $0x8] sm:$0xff]
    %v1301 = vld [vmem:[%s5 + $0x10] sm:$0xff]
    %v1302 = vld [vmem:[%s5 + $0x18] sm:$0xff]
    %v1303 = vld [vmem:[%s7] sm:$0xff]
    %v1304 = vld [vmem:[%s7 + $0x8] sm:$0xff]
    %v1305 = vld [vmem:[%s7 + $0x10] sm:$0xff]
    %v1306 = vld [vmem:[%s7 + $0x18] sm:$0xff]
    %1308 = vset.pattern.permute.xlu0 0
    %1309 = vperm.xlu0 %1308, %v1303
    %v1310 = vpop.permute.xlu0 %1309
    %1313 = vset.pattern.permute.xlu0 0
    %1314 = vperm.xlu0 %1313, %v1304
    %v1315 = vpop.permute.xlu0 %1314
    %1318 = vset.pattern.permute.xlu0 0
    %1319 = vperm.xlu0 %1318, %v1305
    %v1320 = vpop.permute.xlu0 %1319
    %1323 = vset.pattern.permute.xlu0 0
    %1324 = vperm.xlu0 %1323, %v1306
    %v1325 = vpop.permute.xlu0 %1324
    %v1328 = vsel %vm113, %v1299, 0
    %v1331 = vsel %vm113, %v1300, 0
    %v1334 = vsel %vm113, %v1301, 0
    %v1337 = vsel %vm113, %v1302, 0
    %1339 = vmatpush.msra.mxu0 0.0
    %1340 = vmatpush.msra.mxu0 0.0
    %1341 = vmatpush.msra.mxu0 0.0
    %1342 = vmatpush.msra.mxu0 0.0
    %1343 = vmatpush.msra.mxu0 0.0
    %1344 = vmatpush.msra.mxu0 0.0
    %1345 = vmatpush.msra.mxu0 0.0
    %1346 = vmatpush.msra.mxu0 0.0
    %1347 = vmatpush.msra.mxu0 %v48
    %1348 = vmatpush.msra.mxu0 %v47
    %1349 = vmatpush.msra.mxu0 %v46
    %1350 = vmatpush.msra.mxu0 %v45
    %1351 = vmatpush.msra.mxu0 %v44
    %1352 = vmatpush.msra.mxu0 %v43
    %1353 = vmatpush.msra.mxu0 %v42
    %1354 = vmatpush.msra.mxu0 %v41
    %1355 = vmatmul.f32.gmra.mxu0 %v1328
    %v1356 = vpop.f32.mrf.mxu0
    %v1357 = vadd.f32 %v1310, %v1356
    %1358 = vmatmul.f32.gmra.mxu0 %v1331
    %v1359 = vpop.f32.mrf.mxu0
    %v1360 = vadd.f32 %v1315, %v1359
    %1361 = vmatmul.f32.gmra.mxu0 %v1334
    %v1362 = vpop.f32.mrf.mxu0
    %v1363 = vadd.f32 %v1320, %v1362
    %1364 = vmatmul.f32.gmra.mxu0 %v1337
    %v1365 = vpop.f32.mrf.mxu0
    %v1366 = vadd.f32 %v1325, %v1365
    %1367 = vdwg.mxu0
    %v1368 = vmax.f32 %v1357, 0.0
    %v1369 = vmax.f32 %v1360, 0.0
    %v1370 = vmax.f32 %v1363, 0.0
    %v1371 = vmax.f32 %v1366, 0.0
    %v1372 = vld [vmem:[%s6] sm:$0xff]
    %v1373 = vld [vmem:[%s6 + $0x8] sm:$0xff]
    %v1374 = vld [vmem:[%s7 + $0x20] sm:$0xff]
    %v1375 = vld [vmem:[%s7 + $0x28] sm:$0xff]
    %1377 = vset.pattern.permute.xlu0 0
    %1378 = vperm.xlu0 %1377, %v1374
    %v1379 = vpop.permute.xlu0 %1378
    %1382 = vset.pattern.permute.xlu0 0
    %1383 = vperm.xlu0 %1382, %v1375
    %v1384 = vpop.permute.xlu0 %1383
    %vm1386 = vcmask 261120
    %v1388 = vsel %vm1386, %v1372, 0
    %v1391 = vsel %vm1386, %v1373, 0
    %1393 = vmatpush.msra.mxu0 0.0
    %1394 = vmatpush.msra.mxu0 0.0
    %1395 = vmatpush.msra.mxu0 0.0
    %1396 = vmatpush.msra.mxu0 0.0
    %1397 = vmatpush.msra.mxu0 0.0
    %1398 = vmatpush.msra.mxu0 0.0
    %1399 = vmatpush.msra.mxu0 0.0
    %1400 = vmatpush.msra.mxu0 0.0
    %1401 = vmatpush.msra.mxu0 0.0
    %1402 = vmatpush.msra.mxu0 0.0
    %1403 = vmatpush.msra.mxu0 0.0
    %1404 = vmatpush.msra.mxu0 0.0
    %1405 = vmatpush.msra.mxu0 %v1371
    %1406 = vmatpush.msra.mxu0 %v1370
    %1407 = vmatpush.msra.mxu0 %v1369
    %1408 = vmatpush.msra.mxu0 %v1368
    %1409 = vmatmul.f32.gmra.mxu0 %v1388
    %v1410 = vpop.f32.mrf.mxu0
    %v1411 = vadd.f32 %v1379, %v1410
    %1412 = vmatmul.f32.gmra.mxu0 %v1391
    %v1413 = vpop.f32.mrf.mxu0
    %v1414 = vadd.f32 %v1384, %v1413
    %1415 = vdwg.mxu0
    %v1416 = vmax.f32 %v1411, 0.0
    %v1417 = vmax.f32 %v1414, 0.0
    %v1418 = vld [vmem:[%s8 + $0x1] sm:$0x1]
    %vm1419 = vcmask 130048
    %v1421 = vsel %vm1419, %v1418, 0
    %1423 = vmatpush.msra.mxu0 0.0
    %1424 = vmatpush.msra.mxu0 0.0
    %1425 = vmatpush.msra.mxu0 0.0
    %1426 = vmatpush.msra.mxu0 0.0
    %1427 = vmatpush.msra.mxu0 0.0
    %1428 = vmatpush.msra.mxu0 0.0
    %1429 = vmatpush.msra.mxu0 0.0
    %1430 = vmatpush.msra.mxu0 0.0
    %1431 = vmatpush.msra.mxu0 0.0
    %1432 = vmatpush.msra.mxu0 0.0
    %1433 = vmatpush.msra.mxu0 0.0
    %1434 = vmatpush.msra.mxu0 0.0
    %1435 = vmatpush.msra.mxu0 0.0
    %1436 = vmatpush.msra.mxu0 0.0
    %1437 = vmatpush.msra.mxu0 %v1417
    %1438 = vmatpush.msra.mxu0 %v1416
    %1439 = vmatmul.f32.gmra.mxu0 %v1421
    %v1440 = vpop.f32.mrf.mxu0
    %v1441 = vadd.f32 0.0, %v1440
    %1442 = vdwg.mxu0
    %v1443 = vld [vmem:[%s1] sm:$0x1]
    %v1444 = vadd.f32 %v1443, %v1297
    %v1445 = vadd.f32 %v1444, %v1441
    %1446 = vst [vmem:[#allocation2] sm:$0x1] %v1445
    // Predicated region
    $region38: #{tpu_custom_call.1} parent=1 // pred_check
      _
    $region39: #{tpu_custom_call.1} parent=1 // pred_check_branch
      %1448 = sbr.rel (0) target = $region41
    $region40: #{tpu_custom_call.1} parent=1 // pred_region
      %1450 = vsyncadd [#allocation3], 0
      %s1452 = sshll.u32 [#allocation2], 4
      %s1453 = int_to_ptr.vmem [resolvable:$true] %s1452
      %s1454 = sshll.u32 %s9, 4
      %s1455 = int_to_ptr.hbm [resolvable:$true] %s1454
      %1457 = dma.vmem_to_hbm [thread:$0]  %s1453, 16, %s1455, [#allocation3]
    $region41: #{tpu_custom_call.1} parent=1 // pred_fallthru
      _
    // Predicated region
    $region42: #{tpu_custom_call.1} parent=1 // pred_check
      _
    $region43: #{tpu_custom_call.1} parent=1 // pred_check_branch
      %1459 = sbr.rel (0) target = $region45
    $region44: #{tpu_custom_call.1} parent=1 // pred_region
      %1461 = dma.done [#allocation3], 16
    $region45: #{tpu_custom_call.1} parent=1 // pred_fallthru
      _
    %1462 = vsyncpa [#allocation3], 1

</llo_original>
